<compile_context>
chip_gen: v7x
topology: tpu7x:2x2x1
jax: 0.10.0
libtpu: 0.0.40
codegen_flags: <defaults>
</compile_context>

<pallas_src>
import numpy as np
import jax
import jax.numpy as jnp
from jax.experimental import pallas as pl
from jax.experimental.pallas import tpu as pltpu

# ---------------- problem sizes (small, consistent with the module) ----------------
B = 2              # batch
CMEL = 8           # n_mels
T = 16             # mel frames
K = 7              # conv kernel size
PAD = K // 2       # conv padding
NFFT = 16          # gen_istft_n_fft
HOP = 4            # gen_istft_hop_size
F = NFFT // 2 + 1  # onesided bins = 9
COUT = 2 * F       # conv output channels = 18
S = NFFT // HOP    # overlapping frames per output sample = 4
L_FULL = (T - 1) * HOP + NFFT   # untrimmed istft length = 76
L_OUT = (T - 1) * HOP           # torch.istft(center=True) length = 60
RT = L_OUT // HOP               # trimmed overlap-add row groups = 15
TRIM = NFFT // 2                # center trim = 8 samples
TRIM_R = TRIM // HOP            # = 2 row groups

MAX_WAV_VALUE = 32768.0  # only used by .infer(), not by forward()

# ---------------- constant-slab row layout (all regions start lane 0, 8-row aligned) ---------
LANES = 128
ROW_SHB = 0                       # K blocks of 32 rows : per-tap shift matrices   (32, 32)
ROW_WCAT = ROW_SHB + K * B * T    # 32 rows             : conv weights             (32, 56)
ROW_BIAS = ROW_WCAT + 32          # 32 rows             : conv bias, pre-broadcast (32, 32)
ROW_LG = ROW_BIAS + 32            # S blocks of 8 rows  : inverse-rDFT basis rows  (4, 32)
ROW_RSEL = ROW_LG + S * 8         # S blocks of 32 rows : OLA select (trim folded) (32, 30)
ROW_SPR = ROW_RSEL + S * 32       # HOP blocks of 32    : lane-spread matrices     (30, 120)
ROW_ID = ROW_SPR + HOP * 32       # HOP blocks of 8     : one-hot row extractors   (1, 4)
ROW_IENV = ROW_ID + HOP * 8       # 8 rows              : 1/envelope, trimmed      (1, 120)
SLAB_ROWS = ROW_IENV + 8          # = 616


# ---------------- single fused kernel ----------------
def fused_kernel(x_ref, slab_ref, out_ref):
    f32 = jnp.float32

    # (1) NCW input, batches side by side: (CMEL, B*T) - channels on sublanes, time on lanes.
    xside = jnp.concatenate([x_ref[b] for b in range(B)], axis=1)            # (8, 32)

    # (2) im2col via K per-tap shift matmuls, stacked on the (aligned) sublane axis.
    xim = jnp.concatenate(
        [jnp.dot(xside,
                 slab_ref[ROW_SHB + k * 32: ROW_SHB + (k + 1) * 32, 0:B * T],
                 preferred_element_type=f32)
         for k in range(K)], axis=0)                                         # (56, 32)

    # (3) terminal projection conv; output channels on sublanes, rows [spec 0:9 | phase 16:25].
    conv = jnp.dot(slab_ref[ROW_WCAT:ROW_WCAT + 32, 0:K * CMEL], xim,
                   preferred_element_type=f32)
    conv = conv + slab_ref[ROW_BIAS:ROW_BIAS + 32, 0:B * T]                  # (32, 32)

    # (4) spec = exp(.), phase = sin(.); the split at row 16 is sublane-aligned.
    spec = jnp.exp(conv[0:16, :])          # rows 9:16 = exp(0)=1 (dead, killed by zero basis)
    phase = jnp.sin(conv[16:32, :])        # rows 25:32 = 0
    real = spec * jnp.cos(phase)
    imag = spec * jnp.sin(phase)
    ri = jnp.concatenate([real, imag], axis=0)                               # (32, 32)

    # (5) windowed inverse rDFT + overlap-add + center trim: 2 matmuls per overlap index s.
    outT = None
    for s in range(S):
        lg = slab_ref[ROW_LG + s * 8: ROW_LG + s * 8 + HOP, 0:32]            # (4, 32)
        rsel = slab_ref[ROW_RSEL + s * 32: ROW_RSEL + (s + 1) * 32, 0:B * RT]  # (32, 30)
        term = jnp.dot(jnp.dot(lg, ri, preferred_element_type=f32), rsel,
                       preferred_element_type=f32)
        outT = term if outT is None else outT + term                         # (4, 30)

    # (6) interleave the HOP phases into one lane-dense row, then apply 1/envelope.
    y = None
    for h in range(HOP):
        eh = slab_ref[ROW_ID + h * 8: ROW_ID + h * 8 + 1, 0:HOP]             # (1, 4)
        spr = slab_ref[ROW_SPR + h * 32: ROW_SPR + h * 32 + B * RT, 0:B * L_OUT]  # (30, 120)
        term = jnp.dot(jnp.dot(eh, outT, preferred_element_type=f32), spr,
                       preferred_element_type=f32)
        y = term if y is None else y + term                                  # (1, 120)
    y = y * slab_ref[ROW_IENV:ROW_IENV + 1, 0:B * L_OUT]

    # (7) per-batch lane-dense stores of the final (B, 1, L_OUT) result.
    for b in range(B):
        out_ref[b, 0, :] = y[0, b * L_OUT:(b + 1) * L_OUT]


# ---------------- host-side constants ----------------
def _istft_basis_np():
    n = np.arange(NFFT, dtype=np.float32)
    f = np.arange(F, dtype=np.float32)
    window = 0.5 * (1.0 - np.cos(2.0 * np.pi * n / NFFT))                    # periodic Hann
    ang = 2.0 * np.pi * f[:, None] * n[None, :] / NFFT
    wgt = np.where((np.arange(F) == 0) | (np.arange(F) == NFFT // 2), 1.0, 2.0).astype(np.float32)
    bc = (wgt[:, None] / NFFT) * np.cos(ang) * window[None, :]               # (F, NFFT)
    bs = (wgt[:, None] / NFFT) * np.sin(ang) * window[None, :]               # (F, NFFT)
    return window.astype(np.float32), bc.astype(np.float32), bs.astype(np.float32)


def make_slab(w, bias):
    # w: (K, CMEL, COUT) conv weight; bias: (COUT,); channels [0:F]=spec-logit, [F:2F]=phase.
    w = np.asarray(w, np.float32)
    bias = np.asarray(bias, np.float32)
    slab = np.zeros((SLAB_ROWS, LANES), np.float32)

    # per-tap time-shift (batch block-diagonal) matrices: xim_k = xside @ shb_k
    for k in range(K):
        blk = np.zeros((B * T, B * T), np.float32)
        for b in range(B):
            for t in range(T):
                tp = t + k - PAD
                if 0 <= tp < T:
                    blk[b * T + tp, b * T + t] = 1.0
        slab[ROW_SHB + k * 32: ROW_SHB + (k + 1) * 32, 0:B * T] = blk

    # projection weights/bias; conv row layout: [spec 0:9 | zeros | phase 16:25 | zeros]
    for f in range(F):
        for k in range(K):
            slab[ROW_WCAT + f, k * CMEL:(k + 1) * CMEL] = w[k, :, f]
            slab[ROW_WCAT + 16 + f, k * CMEL:(k + 1) * CMEL] = w[k, :, F + f]
        slab[ROW_BIAS + f, 0:B * T] = bias[f]
        slab[ROW_BIAS + 16 + f, 0:B * T] = bias[F + f]

    # windowed inverse-rDFT basis rows grouped by overlap index s (dead columns stay zero)
    window, bc, bs = _istft_basis_np()
    gt = np.zeros((NFFT, 32), np.float32)
    gt[:, 0:F] = bc.T
    gt[:, 16:16 + F] = -bs.T
    for s in range(S):
        slab[ROW_LG + s * 8: ROW_LG + s * 8 + HOP, 0:32] = gt[s * HOP:(s + 1) * HOP, :]

    # overlap-add selection with torch.istft(center=True) trim folded in
    for s in range(S):
        r = np.zeros((B * T, B * RT), np.float32)
        for b in range(B):
            for rp in range(RT):
                t = rp + TRIM_R - s
                if 0 <= t < T:
                    r[b * T + t, b * RT + rp] = 1.0
        slab[ROW_RSEL + s * 32: ROW_RSEL + (s + 1) * 32, 0:B * RT] = r

    # lane-spread matrices: (b, r') -> output lane b*L_OUT + HOP*r' + h; plus row extractors
    for h in range(HOP):
        sp = np.zeros((B * RT, B * L_OUT), np.float32)
        for b in range(B):
            for rp in range(RT):
                sp[b * RT + rp, b * L_OUT + HOP * rp + h] = 1.0
        slab[ROW_SPR + h * 32: ROW_SPR + h * 32 + B * RT, 0:B * L_OUT] = sp
        slab[ROW_ID + h * 8, h] = 1.0

    # 1 / window-squared envelope (matches torch.istft's >1e-11 guard), trimmed, tiled per batch
    win_sq = window * window
    env = np.zeros((L_FULL,), np.float32)
    for t in range(T):
        env[t * HOP: t * HOP + NFFT] += win_sq
    env = np.where(env > 1e-11, env, 1.0)
    ienv = (1.0 / env[TRIM: TRIM + L_OUT]).astype(np.float32)
    slab[ROW_IENV, 0:B * L_OUT] = np.tile(ienv, B)

    return jnp.asarray(slab)


# ---------------- wrapper: literally just the pallas_call ----------------
@jax.jit
def istftnetfe_forward(x, slab):
    # x: (B, n_mels, T) NCW like PyTorch; slab: (SLAB_ROWS, 128) packed constants.
    return pl.pallas_call(
        fused_kernel,
        out_shape=jax.ShapeDtypeStruct((B, 1, L_OUT), jnp.float32),
        in_specs=[pl.BlockSpec(memory_space=pltpu.MemorySpace.VMEM),
                  pl.BlockSpec(memory_space=pltpu.MemorySpace.VMEM)],
        out_specs=pl.BlockSpec(memory_space=pltpu.MemorySpace.VMEM),
    )(x, slab)
    # At real iSTFTNet sizes (T in the hundreds+), add a "parallel" grid axis over B / T tiles
    # for v7x's 2 TensorCores; at this size a single invocation is optimal.


# ---------------- pure-JAX reference (original exp/sin/cos chain) ----------------
def reference_forward(x, w, bias):
    xt = jnp.transpose(x, (0, 2, 1)).astype(jnp.float32)
    xp = jnp.pad(xt, ((0, 0), (PAD, PAD), (0, 0)))
    conv = jnp.zeros((B, T, COUT), jnp.float32)
    for k in range(K):
        conv = conv + jnp.einsum('btc,cd->btd', xp[:, k:k + T, :], w[k])
    conv = conv + bias[None, None, :]
    spec = jnp.exp(conv[..., :F])
    phase = jnp.sin(conv[..., F:])
    real = spec * jnp.cos(phase)
    imag = spec * jnp.sin(phase)

    window, bc, bs = _istft_basis_np()
    bc, bs = jnp.asarray(bc), jnp.asarray(bs)
    frames = jnp.einsum('btf,fn->btn', real, bc) - jnp.einsum('btf,fn->btn', imag, bs)
    y = jnp.zeros((B, L_FULL), jnp.float32)
    for t in range(T):
        y = y.at[:, t * HOP:t * HOP + NFFT].add(frames[:, t])
    win_sq = jnp.asarray(window) ** 2
    env = jnp.zeros((L_FULL,), jnp.float32)
    for t in range(T):
        env = env.at[t * HOP:t * HOP + NFFT].add(win_sq)
    env = jnp.where(env > 1e-11, env, 1.0)
    y = y / env[None, :]
    y = y[:, TRIM: TRIM + L_OUT]
    return y[:, None, :]


if __name__ == "__main__":
    key = jax.random.PRNGKey(0)
    kx, kw, kb = jax.random.split(key, 3)

    # deterministic synthetic parameters (shapes implied by the generator projection)
    w = 0.05 * jax.random.normal(kw, (K, CMEL, COUT), dtype=jnp.float32)
    bias = 0.05 * jax.random.normal(kb, (COUT,), dtype=jnp.float32)

    # deterministic example mel input, NCW like PyTorch: (B, n_mels, T)
    x = jax.random.normal(kx, (B, CMEL, T), dtype=jnp.float32)

    slab = make_slab(np.asarray(w), np.asarray(bias))

    y = istftnetfe_forward(x, slab)
    y = jax.block_until_ready(y)

    y_ref = reference_forward(x, w, bias)
    np.testing.assert_allclose(np.asarray(y), np.asarray(y_ref), rtol=1e-3, atol=1e-3)
    assert y.shape == (B, 1, L_OUT)

    print("KERNEL_OK")
</pallas_src>

<mosaic_0001>
module attributes {stable_mosaic.version = 11 : i64} {
  func.func @fused_kernel(%arg0: memref<2x8x16xf32, #tpu.memory_space<vmem>>, %arg1: memref<616x128xf32, #tpu.memory_space<vmem>>, %arg2: memref<2x1x60xf32, #tpu.memory_space<vmem>>) attributes {dimension_semantics = [], scalar_prefetch = 0 : i64, scratch_operands = 0 : i64, tpu.core_type = #tpu.core_type<tc>} {
    %c0 = arith.constant 0 : index
    %c0_0 = arith.constant 0 : index
    %c0_1 = arith.constant 0 : index
    %0 = vector.load %arg0[%c0, %c0_0, %c0_1] : memref<2x8x16xf32, #tpu.memory_space<vmem>>, vector<1x8x16xf32>
    %1 = vector.shape_cast %0 : vector<1x8x16xf32> to vector<8x16xf32>
    %c1 = arith.constant 1 : index
    %c0_2 = arith.constant 0 : index
    %c0_3 = arith.constant 0 : index
    %2 = vector.load %arg0[%c1, %c0_2, %c0_3] : memref<2x8x16xf32, #tpu.memory_space<vmem>>, vector<1x8x16xf32>
    %3 = vector.shape_cast %2 : vector<1x8x16xf32> to vector<8x16xf32>
    %4 = tpu.concatenate %1, %3 in 1 : vector<8x16xf32>, vector<8x16xf32> -> vector<8x32xf32>
    %c0_4 = arith.constant 0 : index
    %c0_5 = arith.constant 0 : index
    %5 = vector.load %arg1[%c0_4, %c0_5] : memref<616x128xf32, #tpu.memory_space<vmem>>, vector<32x32xf32>
    %cst = arith.constant dense<0.000000e+00> : vector<8x32xf32>
    %6 = tpu.matmul %4, %5, %cst {dimension_numbers = #tpu.dot_dimension_numbers<[1], [0], [0], [1], [0, 0, 1, 1], [], []>} : vector<8x32xf32>, vector<32x32xf32>, vector<8x32xf32> -> vector<8x32xf32>
    %c32 = arith.constant 32 : index
    %c0_6 = arith.constant 0 : index
    %7 = vector.load %arg1[%c32, %c0_6] : memref<616x128xf32, #tpu.memory_space<vmem>>, vector<32x32xf32>
    %cst_7 = arith.constant dense<0.000000e+00> : vector<8x32xf32>
    %8 = tpu.matmul %4, %7, %cst_7 {dimension_numbers = #tpu.dot_dimension_numbers<[1], [0], [0], [1], [0, 0, 1, 1], [], []>} : vector<8x32xf32>, vector<32x32xf32>, vector<8x32xf32> -> vector<8x32xf32>
    %c64 = arith.constant 64 : index
    %c0_8 = arith.constant 0 : index
    %9 = vector.load %arg1[%c64, %c0_8] : memref<616x128xf32, #tpu.memory_space<vmem>>, vector<32x32xf32>
    %cst_9 = arith.constant dense<0.000000e+00> : vector<8x32xf32>
    %10 = tpu.matmul %4, %9, %cst_9 {dimension_numbers = #tpu.dot_dimension_numbers<[1], [0], [0], [1], [0, 0, 1, 1], [], []>} : vector<8x32xf32>, vector<32x32xf32>, vector<8x32xf32> -> vector<8x32xf32>
    %c96 = arith.constant 96 : index
    %c0_10 = arith.constant 0 : index
    %11 = vector.load %arg1[%c96, %c0_10] : memref<616x128xf32, #tpu.memory_space<vmem>>, vector<32x32xf32>
    %cst_11 = arith.constant dense<0.000000e+00> : vector<8x32xf32>
    %12 = tpu.matmul %4, %11, %cst_11 {dimension_numbers = #tpu.dot_dimension_numbers<[1], [0], [0], [1], [0, 0, 1, 1], [], []>} : vector<8x32xf32>, vector<32x32xf32>, vector<8x32xf32> -> vector<8x32xf32>
    %c128 = arith.constant 128 : index
    %c0_12 = arith.constant 0 : index
    %13 = vector.load %arg1[%c128, %c0_12] : memref<616x128xf32, #tpu.memory_space<vmem>>, vector<32x32xf32>
    %cst_13 = arith.constant dense<0.000000e+00> : vector<8x32xf32>
    %14 = tpu.matmul %4, %13, %cst_13 {dimension_numbers = #tpu.dot_dimension_numbers<[1], [0], [0], [1], [0, 0, 1, 1], [], []>} : vector<8x32xf32>, vector<32x32xf32>, vector<8x32xf32> -> vector<8x32xf32>
    %c160 = arith.constant 160 : index
    %c0_14 = arith.constant 0 : index
    %15 = vector.load %arg1[%c160, %c0_14] : memref<616x128xf32, #tpu.memory_space<vmem>>, vector<32x32xf32>
    %cst_15 = arith.constant dense<0.000000e+00> : vector<8x32xf32>
    %16 = tpu.matmul %4, %15, %cst_15 {dimension_numbers = #tpu.dot_dimension_numbers<[1], [0], [0], [1], [0, 0, 1, 1], [], []>} : vector<8x32xf32>, vector<32x32xf32>, vector<8x32xf32> -> vector<8x32xf32>
    %c192 = arith.constant 192 : index
    %c0_16 = arith.constant 0 : index
    %17 = vector.load %arg1[%c192, %c0_16] : memref<616x128xf32, #tpu.memory_space<vmem>>, vector<32x32xf32>
    %cst_17 = arith.constant dense<0.000000e+00> : vector<8x32xf32>
    %18 = tpu.matmul %4, %17, %cst_17 {dimension_numbers = #tpu.dot_dimension_numbers<[1], [0], [0], [1], [0, 0, 1, 1], [], []>} : vector<8x32xf32>, vector<32x32xf32>, vector<8x32xf32> -> vector<8x32xf32>
    %19 = tpu.concatenate %6, %8, %10, %12, %14, %16, %18 in 0 : vector<8x32xf32>, vector<8x32xf32>, vector<8x32xf32>, vector<8x32xf32>, vector<8x32xf32>, vector<8x32xf32>, vector<8x32xf32> -> vector<56x32xf32>
    %c224 = arith.constant 224 : index
    %c0_18 = arith.constant 0 : index
    %20 = vector.load %arg1[%c224, %c0_18] : memref<616x128xf32, #tpu.memory_space<vmem>>, vector<32x56xf32>
    %cst_19 = arith.constant dense<0.000000e+00> : vector<32x32xf32>
    %21 = tpu.matmul %20, %19, %cst_19 {dimension_numbers = #tpu.dot_dimension_numbers<[1], [0], [0], [1], [0, 0, 1, 1], [], []>} : vector<32x56xf32>, vector<56x32xf32>, vector<32x32xf32> -> vector<32x32xf32>
    %c256 = arith.constant 256 : index
    %c0_20 = arith.constant 0 : index
    %22 = vector.load %arg1[%c256, %c0_20] : memref<616x128xf32, #tpu.memory_space<vmem>>, vector<32x32xf32>
    %23 = arith.addf %21, %22 : vector<32x32xf32>
    %24 = vector.extract_strided_slice %23 {offsets = [0, 0], sizes = [16, 32], strides = [1, 1]} : vector<32x32xf32> to vector<16x32xf32>
    %25 = math.exp %24 : vector<16x32xf32>
    %26 = vector.extract_strided_slice %23 {offsets = [16, 0], sizes = [16, 32], strides = [1, 1]} : vector<32x32xf32> to vector<16x32xf32>
    %27 = math.sin %26 : vector<16x32xf32>
    %28 = math.cos %27 : vector<16x32xf32>
    %29 = arith.mulf %25, %28 : vector<16x32xf32>
    %30 = math.sin %27 : vector<16x32xf32>
    %31 = arith.mulf %25, %30 : vector<16x32xf32>
    %32 = tpu.concatenate %29, %31 in 0 : vector<16x32xf32>, vector<16x32xf32> -> vector<32x32xf32>
    %c288 = arith.constant 288 : index
    %c0_21 = arith.constant 0 : index
    %33 = vector.load %arg1[%c288, %c0_21] : memref<616x128xf32, #tpu.memory_space<vmem>>, vector<4x32xf32>
    %c320 = arith.constant 320 : index
    %c0_22 = arith.constant 0 : index
    %34 = vector.load %arg1[%c320, %c0_22] : memref<616x128xf32, #tpu.memory_space<vmem>>, vector<32x30xf32>
    %cst_23 = arith.constant dense<0.000000e+00> : vector<4x32xf32>
    %35 = tpu.matmul %33, %32, %cst_23 {dimension_numbers = #tpu.dot_dimension_numbers<[1], [0], [0], [1], [0, 0, 1, 1], [], []>} : vector<4x32xf32>, vector<32x32xf32>, vector<4x32xf32> -> vector<4x32xf32>
    %cst_24 = arith.constant dense<0.000000e+00> : vector<4x30xf32>
    %36 = tpu.matmul %35, %34, %cst_24 {dimension_numbers = #tpu.dot_dimension_numbers<[1], [0], [0], [1], [0, 0, 1, 1], [], []>} : vector<4x32xf32>, vector<32x30xf32>, vector<4x30xf32> -> vector<4x30xf32>
    %c296 = arith.constant 296 : index
    %c0_25 = arith.constant 0 : index
    %37 = vector.load %arg1[%c296, %c0_25] : memref<616x128xf32, #tpu.memory_space<vmem>>, vector<4x32xf32>
    %c352 = arith.constant 352 : index
    %c0_26 = arith.constant 0 : index
    %38 = vector.load %arg1[%c352, %c0_26] : memref<616x128xf32, #tpu.memory_space<vmem>>, vector<32x30xf32>
    %cst_27 = arith.constant dense<0.000000e+00> : vector<4x32xf32>
    %39 = tpu.matmul %37, %32, %cst_27 {dimension_numbers = #tpu.dot_dimension_numbers<[1], [0], [0], [1], [0, 0, 1, 1], [], []>} : vector<4x32xf32>, vector<32x32xf32>, vector<4x32xf32> -> vector<4x32xf32>
    %cst_28 = arith.constant dense<0.000000e+00> : vector<4x30xf32>
    %40 = tpu.matmul %39, %38, %cst_28 {dimension_numbers = #tpu.dot_dimension_numbers<[1], [0], [0], [1], [0, 0, 1, 1], [], []>} : vector<4x32xf32>, vector<32x30xf32>, vector<4x30xf32> -> vector<4x30xf32>
    %41 = arith.addf %36, %40 : vector<4x30xf32>
    %c304 = arith.constant 304 : index
    %c0_29 = arith.constant 0 : index
    %42 = vector.load %arg1[%c304, %c0_29] : memref<616x128xf32, #tpu.memory_space<vmem>>, vector<4x32xf32>
    %c384 = arith.constant 384 : index
    %c0_30 = arith.constant 0 : index
    %43 = vector.load %arg1[%c384, %c0_30] : memref<616x128xf32, #tpu.memory_space<vmem>>, vector<32x30xf32>
    %cst_31 = arith.constant dense<0.000000e+00> : vector<4x32xf32>
    %44 = tpu.matmul %42, %32, %cst_31 {dimension_numbers = #tpu.dot_dimension_numbers<[1], [0], [0], [1], [0, 0, 1, 1], [], []>} : vector<4x32xf32>, vector<32x32xf32>, vector<4x32xf32> -> vector<4x32xf32>
    %cst_32 = arith.constant dense<0.000000e+00> : vector<4x30xf32>
    %45 = tpu.matmul %44, %43, %cst_32 {dimension_numbers = #tpu.dot_dimension_numbers<[1], [0], [0], [1], [0, 0, 1, 1], [], []>} : vector<4x32xf32>, vector<32x30xf32>, vector<4x30xf32> -> vector<4x30xf32>
    %46 = arith.addf %41, %45 : vector<4x30xf32>
    %c312 = arith.constant 312 : index
    %c0_33 = arith.constant 0 : index
    %47 = vector.load %arg1[%c312, %c0_33] : memref<616x128xf32, #tpu.memory_space<vmem>>, vector<4x32xf32>
    %c416 = arith.constant 416 : index
    %c0_34 = arith.constant 0 : index
    %48 = vector.load %arg1[%c416, %c0_34] : memref<616x128xf32, #tpu.memory_space<vmem>>, vector<32x30xf32>
    %cst_35 = arith.constant dense<0.000000e+00> : vector<4x32xf32>
    %49 = tpu.matmul %47, %32, %cst_35 {dimension_numbers = #tpu.dot_dimension_numbers<[1], [0], [0], [1], [0, 0, 1, 1], [], []>} : vector<4x32xf32>, vector<32x32xf32>, vector<4x32xf32> -> vector<4x32xf32>
    %cst_36 = arith.constant dense<0.000000e+00> : vector<4x30xf32>
    %50 = tpu.matmul %49, %48, %cst_36 {dimension_numbers = #tpu.dot_dimension_numbers<[1], [0], [0], [1], [0, 0, 1, 1], [], []>} : vector<4x32xf32>, vector<32x30xf32>, vector<4x30xf32> -> vector<4x30xf32>
    %51 = arith.addf %46, %50 : vector<4x30xf32>
    %c576 = arith.constant 576 : index
    %c0_37 = arith.constant 0 : index
    %52 = vector.load %arg1[%c576, %c0_37] : memref<616x128xf32, #tpu.memory_space<vmem>>, vector<1x4xf32>
    %c448 = arith.constant 448 : index
    %c0_38 = arith.constant 0 : index
    %53 = vector.load %arg1[%c448, %c0_38] : memref<616x128xf32, #tpu.memory_space<vmem>>, vector<30x120xf32>
    %cst_39 = arith.constant dense<0.000000e+00> : vector<1x30xf32>
    %54 = tpu.matmul %52, %51, %cst_39 {dimension_numbers = #tpu.dot_dimension_numbers<[1], [0], [0], [1], [0, 0, 1, 1], [], []>} : vector<1x4xf32>, vector<4x30xf32>, vector<1x30xf32> -> vector<1x30xf32>
    %cst_40 = arith.constant dense<0.000000e+00> : vector<1x120xf32>
    %55 = tpu.matmul %54, %53, %cst_40 {dimension_numbers = #tpu.dot_dimension_numbers<[1], [0], [0], [1], [0, 0, 1, 1], [], []>} : vector<1x30xf32>, vector<30x120xf32>, vector<1x120xf32> -> vector<1x120xf32>
    %c584 = arith.constant 584 : index
    %c0_41 = arith.constant 0 : index
    %56 = vector.load %arg1[%c584, %c0_41] : memref<616x128xf32, #tpu.memory_space<vmem>>, vector<1x4xf32>
    %c480 = arith.constant 480 : index
    %c0_42 = arith.constant 0 : index
    %57 = vector.load %arg1[%c480, %c0_42] : memref<616x128xf32, #tpu.memory_space<vmem>>, vector<30x120xf32>
    %cst_43 = arith.constant dense<0.000000e+00> : vector<1x30xf32>
    %58 = tpu.matmul %56, %51, %cst_43 {dimension_numbers = #tpu.dot_dimension_numbers<[1], [0], [0], [1], [0, 0, 1, 1], [], []>} : vector<1x4xf32>, vector<4x30xf32>, vector<1x30xf32> -> vector<1x30xf32>
    %cst_44 = arith.constant dense<0.000000e+00> : vector<1x120xf32>
    %59 = tpu.matmul %58, %57, %cst_44 {dimension_numbers = #tpu.dot_dimension_numbers<[1], [0], [0], [1], [0, 0, 1, 1], [], []>} : vector<1x30xf32>, vector<30x120xf32>, vector<1x120xf32> -> vector<1x120xf32>
    %60 = arith.addf %55, %59 : vector<1x120xf32>
    %c592 = arith.constant 592 : index
    %c0_45 = arith.constant 0 : index
    %61 = vector.load %arg1[%c592, %c0_45] : memref<616x128xf32, #tpu.memory_space<vmem>>, vector<1x4xf32>
    %c512 = arith.constant 512 : index
    %c0_46 = arith.constant 0 : index
    %62 = vector.load %arg1[%c512, %c0_46] : memref<616x128xf32, #tpu.memory_space<vmem>>, vector<30x120xf32>
    %cst_47 = arith.constant dense<0.000000e+00> : vector<1x30xf32>
    %63 = tpu.matmul %61, %51, %cst_47 {dimension_numbers = #tpu.dot_dimension_numbers<[1], [0], [0], [1], [0, 0, 1, 1], [], []>} : vector<1x4xf32>, vector<4x30xf32>, vector<1x30xf32> -> vector<1x30xf32>
    %cst_48 = arith.constant dense<0.000000e+00> : vector<1x120xf32>
    %64 = tpu.matmul %63, %62, %cst_48 {dimension_numbers = #tpu.dot_dimension_numbers<[1], [0], [0], [1], [0, 0, 1, 1], [], []>} : vector<1x30xf32>, vector<30x120xf32>, vector<1x120xf32> -> vector<1x120xf32>
    %65 = arith.addf %60, %64 : vector<1x120xf32>
    %c600 = arith.constant 600 : index
    %c0_49 = arith.constant 0 : index
    %66 = vector.load %arg1[%c600, %c0_49] : memref<616x128xf32, #tpu.memory_space<vmem>>, vector<1x4xf32>
    %c544 = arith.constant 544 : index
    %c0_50 = arith.constant 0 : index
    %67 = vector.load %arg1[%c544, %c0_50] : memref<616x128xf32, #tpu.memory_space<vmem>>, vector<30x120xf32>
    %cst_51 = arith.constant dense<0.000000e+00> : vector<1x30xf32>
    %68 = tpu.matmul %66, %51, %cst_51 {dimension_numbers = #tpu.dot_dimension_numbers<[1], [0], [0], [1], [0, 0, 1, 1], [], []>} : vector<1x4xf32>, vector<4x30xf32>, vector<1x30xf32> -> vector<1x30xf32>
    %cst_52 = arith.constant dense<0.000000e+00> : vector<1x120xf32>
    %69 = tpu.matmul %68, %67, %cst_52 {dimension_numbers = #tpu.dot_dimension_numbers<[1], [0], [0], [1], [0, 0, 1, 1], [], []>} : vector<1x30xf32>, vector<30x120xf32>, vector<1x120xf32> -> vector<1x120xf32>
    %70 = arith.addf %65, %69 : vector<1x120xf32>
    %c608 = arith.constant 608 : index
    %c0_53 = arith.constant 0 : index
    %71 = vector.load %arg1[%c608, %c0_53] : memref<616x128xf32, #tpu.memory_space<vmem>>, vector<1x120xf32>
    %72 = arith.mulf %70, %71 : vector<1x120xf32>
    %73 = vector.extract_strided_slice %72 {offsets = [0, 0], sizes = [1, 60], strides = [1, 1]} : vector<1x120xf32> to vector<1x60xf32>
    %74 = vector.shape_cast %73 : vector<1x60xf32> to vector<60xf32>
    %c0_54 = arith.constant 0 : index
    %c0_55 = arith.constant 0 : index
    %c0_56 = arith.constant 0 : index
    %75 = vector.load %arg2[%c0_54, %c0_55, %c0_56] : memref<2x1x60xf32, #tpu.memory_space<vmem>>, vector<1x1x60xf32>
    %76 = vector.shape_cast %75 : vector<1x1x60xf32> to vector<60xf32>
    %77 = vector.shape_cast %74 : vector<60xf32> to vector<1x1x60xf32>
    tpu.vector_store %arg2[%c0_54, %c0_55, %c0_56], %77 {strides = array<i32>} : memref<2x1x60xf32, #tpu.memory_space<vmem>>, vector<1x1x60xf32>,
    %78 = vector.extract_strided_slice %72 {offsets = [0, 60], sizes = [1, 60], strides = [1, 1]} : vector<1x120xf32> to vector<1x60xf32>
    %79 = vector.shape_cast %78 : vector<1x60xf32> to vector<60xf32>
    %c1_57 = arith.constant 1 : index
    %c0_58 = arith.constant 0 : index
    %c0_59 = arith.constant 0 : index
    %80 = vector.load %arg2[%c1_57, %c0_58, %c0_59] : memref<2x1x60xf32, #tpu.memory_space<vmem>>, vector<1x1x60xf32>
    %81 = vector.shape_cast %80 : vector<1x1x60xf32> to vector<60xf32>
    %82 = vector.shape_cast %79 : vector<60xf32> to vector<1x1x60xf32>
    tpu.vector_store %arg2[%c1_57, %c0_58, %c0_59], %82 {strides = array<i32>} : memref<2x1x60xf32, #tpu.memory_space<vmem>>, vector<1x1x60xf32>,
    return
  }
}

</mosaic_0001>

<llo_original>
// kernel: istftnetfe_forward.1
$region0: #{istftnetfe_forward.1}
  #allocation0 [shape = 'u32[]', space=smem, size = 0x4, offset = 0x4, fixed_abs, tag = 'smem constant byte address 0x4 - core index']
  #allocation1 [shape = 'u32[144,128]{1,0:T(1,128)}', space=vmem, size = 0x12000, scoped, tag = 'internal scratch']
  %s0 = inlined_call_operand.hbm [shape: f32[2,8,16], index: 0, kind: input, shape index: {}]
  %s1 = inlined_call_operand.hbm [shape: f32[616,128], index: 1, kind: input, shape index: {}]
  %s2 = inlined_call_operand.hbm [shape: f32[2,1,60], index: 2, kind: output, shape index: {}]
  %s3 = sld [smem:[#allocation0]]
  $region26: #{istftnetfe_forward.1} parent=0
    _
  %s5 = ssub.s32 1, %s3
  %s6 = scalar_select 0, %s5, %s3
  $region1: #{istftnetfe_forward.1} parent=0
    #allocation2 [shape = 'u8[8192]{0}', space=vmem, size = 0x2000, scoped, tag = 'input window, operand 0, single buffered']
    #allocation3 [shape = 's32[1]{0}', space=sflag, size = 0x4, scoped, tag = 'scoped memory for istftnetfe_forward.1']
    #allocation4 [shape = 's32[1]{0}', space=sflag, size = 0x4, scoped, tag = 'scoped memory for istftnetfe_forward.1']
    #allocation5 [shape = 'u8[315392]{0}', space=vmem, size = 0x4d000, scoped, tag = 'input window, operand 1, single buffered']
    #allocation6 [shape = 's32[1]{0}', space=sflag, size = 0x4, scoped, tag = 'scoped memory for istftnetfe_forward.1']
    #allocation7 [shape = 'u8[1024]{0}', space=vmem, size = 0x400, scoped, tag = 'output window, operand 0, single buffered']
    %7 = vsyncpa [#allocation3], 0
    %8 = vsyncpa [#allocation6], 0
    %9 = vsyncpa [#allocation4], 0
    // Predicated region
    $region2: #{istftnetfe_forward.1} parent=1 // pred_check
      _
    $region3: #{istftnetfe_forward.1} parent=1 // pred_check_branch
      %11 = sbr.rel (0) target = $region5
    $region4: #{istftnetfe_forward.1} parent=1 // pred_region
      %s13 = ssub.s32 256, 256
      %14 = vsyncadd [#allocation3], %s13
      %s15 = sshll.u32 [#allocation2], 4
      %s16 = int_to_ptr.vmem [resolvable:$true] %s15
      %21 = dma.hbm_to_vmem [thread:$0]  %s0, 256, %s16, [#allocation3], 128, 128, 8
    $region5: #{istftnetfe_forward.1} parent=1 // pred_fallthru
      _
    // Predicated region
    $region6: #{istftnetfe_forward.1} parent=1 // pred_check
      _
    $region7: #{istftnetfe_forward.1} parent=1 // pred_check_branch
      %23 = sbr.rel (0) target = $region9
    $region8: #{istftnetfe_forward.1} parent=1 // pred_region
      %s25 = ssub.s32 9856, 9856
      %26 = vsyncadd [#allocation6], %s25
      %s27 = sshll.u32 [#allocation5], 4
      %s28 = int_to_ptr.vmem [resolvable:$true] %s27
      %33 = dma.hbm_to_vmem [thread:$0]  %s1, 9856, %s28, [#allocation6], 128, 128, 8
    $region9: #{istftnetfe_forward.1} parent=1 // pred_fallthru
      _
    // Predicated region
    $region10: #{istftnetfe_forward.1} parent=1 // pred_check
      _
    $region11: #{istftnetfe_forward.1} parent=1 // pred_check_branch
      %35 = sbr.rel (0) target = $region13
    $region12: #{istftnetfe_forward.1} parent=1 // pred_region
      %36 = dma.done [#allocation3], 256
    $region13: #{istftnetfe_forward.1} parent=1 // pred_fallthru
      _
    // Predicated region
    $region14: #{istftnetfe_forward.1} parent=1 // pred_check
      _
    $region15: #{istftnetfe_forward.1} parent=1 // pred_check_branch
      %38 = sbr.rel (0) target = $region17
    $region16: #{istftnetfe_forward.1} parent=1 // pred_region
      %39 = dma.done [#allocation6], 9856
    $region17: #{istftnetfe_forward.1} parent=1 // pred_fallthru
      _
    %v40 = vld [vmem:[#allocation2] sm:$0xff]
    %s41 = scalar_lea.vmem [#allocation2], 8
    %v42 = vld [vmem:[%s41] sm:$0xff]
    %44 = vrot.lane.b32.xlu0 %v42, 16
    %v45 = vpop.permute.xlu0 %44
    %vm47 = vcmask 130048
    %v48 = vsel %vm47, %v40, %v45
    %v49 = vld [vmem:[#allocation5] sm:$0xff]
    %v50 = vld [vmem:[#allocation5 + $0x8] sm:$0xff]
    %v51 = vld [vmem:[#allocation5 + $0x10] sm:$0xff]
    %v52 = vld [vmem:[#allocation5 + $0x18] sm:$0xff]
    %vm53 = vcmask 261120
    %v55 = vsel %vm53, %v48, 0
    %57 = vmatprep.subr.mxu0 0.0
    %58 = vmatpush1.msra.mxu0 %v49
    %59 = vmatprep.subr.mxu0 0.0
    %60 = vmatpush1.msra.mxu0 %v50
    %61 = vmatprep.subr.mxu0 0.0
    %62 = vmatpush1.msra.mxu0 %v51
    %63 = vmatprep.subr.mxu0 0.0
    %64 = vmatpush1.msra.mxu0 %v52
    %65 = vmatprep.subr.mxu0 0.0
    %66 = vmatpush1.msra.mxu0 0.0
    %67 = vmatprep.subr.mxu0 0.0
    %68 = vmatpush1.msra.mxu0 0.0
    %69 = vmatprep.subr.mxu0 0.0
    %70 = vmatpush1.msra.mxu0 0.0
    %71 = vmatprep.subr.mxu0 0.0
    %72 = vmatpush1.msra.mxu0 0.0
    %73 = vmatprep.subr.mxu0 0.0
    %74 = vmatpush1.msra.mxu0 0.0
    %75 = vmatprep.subr.mxu0 0.0
    %76 = vmatpush1.msra.mxu0 0.0
    %77 = vmatprep.subr.mxu0 0.0
    %78 = vmatpush1.msra.mxu0 0.0
    %79 = vmatprep.subr.mxu0 0.0
    %80 = vmatpush1.msra.mxu0 0.0
    %81 = vmatprep.subr.mxu0 0.0
    %82 = vmatpush1.msra.mxu0 0.0
    %83 = vmatprep.subr.mxu0 0.0
    %84 = vmatpush1.msra.mxu0 0.0
    %85 = vmatprep.subr.mxu0 0.0
    %86 = vmatpush1.msra.mxu0 0.0
    %87 = vmatprep.subr.mxu0 0.0
    %88 = vmatpush1.msra.mxu0 0.0
    %89 = vmatprep.subr.mxu0 0.0
    %90 = vmatpush1.msra.mxu0 0.0
    %91 = vmatprep.subr.mxu0 0.0
    %92 = vmatpush1.msra.mxu0 0.0
    %93 = vmatprep.subr.mxu0 0.0
    %94 = vmatpush1.msra.mxu0 0.0
    %95 = vmatprep.subr.mxu0 0.0
    %96 = vmatpush1.msra.mxu0 0.0
    %97 = vmatprep.subr.mxu0 0.0
    %98 = vmatpush1.msra.mxu0 0.0
    %99 = vmatprep.subr.mxu0 0.0
    %100 = vmatpush1.msra.mxu0 0.0
    %101 = vmatprep.subr.mxu0 0.0
    %102 = vmatpush1.msra.mxu0 0.0
    %103 = vmatprep.subr.mxu0 0.0
    %104 = vmatpush1.msra.mxu0 0.0
    %105 = vmatprep.subr.mxu0 0.0
    %106 = vmatpush1.msra.mxu0 0.0
    %107 = vmatprep.subr.mxu0 0.0
    %108 = vmatpush1.msra.mxu0 0.0
    %109 = vmatprep.subr.mxu0 0.0
    %110 = vmatpush1.msra.mxu0 0.0
    %111 = vmatprep.subr.mxu0 0.0
    %112 = vmatpush1.msra.mxu0 0.0
    %113 = vmatprep.subr.mxu0 0.0
    %114 = vmatpush1.msra.mxu0 0.0
    %115 = vmatprep.subr.mxu0 0.0
    %116 = vmatpush1.msra.mxu0 0.0
    %117 = vmatprep.subr.mxu0 0.0
    %118 = vmatpush1.msra.mxu0 0.0
    %119 = vmatprep.subr.mxu0 0.0
    %120 = vmatpush1.msra.mxu0 0.0
    %121 = vmatprep.mubr.f32.mxu0 0.0
    %122 = vmatmul.mubr.f32.gmra.mrb[0].mxu0 %v55
    %v123 = vpop.f32.mrb[0].mxu0
    %v124 = vadd.f32 0.0, %v123
    %v125 = vpop.f32.mrb[0].mxu0
    %126 = vdwg.mxu0
    %v127 = vld [vmem:[#allocation5 + $0x20] sm:$0xff]
    %v128 = vld [vmem:[#allocation5 + $0x28] sm:$0xff]
    %v129 = vld [vmem:[#allocation5 + $0x30] sm:$0xff]
    %v130 = vld [vmem:[#allocation5 + $0x38] sm:$0xff]
    %131 = vmatprep.subr.mxu0 0.0
    %132 = vmatpush1.msra.mxu0 %v127
    %133 = vmatprep.subr.mxu0 0.0
    %134 = vmatpush1.msra.mxu0 %v128
    %135 = vmatprep.subr.mxu0 0.0
    %136 = vmatpush1.msra.mxu0 %v129
    %137 = vmatprep.subr.mxu0 0.0
    %138 = vmatpush1.msra.mxu0 %v130
    %139 = vmatprep.subr.mxu0 0.0
    %140 = vmatpush1.msra.mxu0 0.0
    %141 = vmatprep.subr.mxu0 0.0
    %142 = vmatpush1.msra.mxu0 0.0
    %143 = vmatprep.subr.mxu0 0.0
    %144 = vmatpush1.msra.mxu0 0.0
    %145 = vmatprep.subr.mxu0 0.0
    %146 = vmatpush1.msra.mxu0 0.0
    %147 = vmatprep.subr.mxu0 0.0
    %148 = vmatpush1.msra.mxu0 0.0
    %149 = vmatprep.subr.mxu0 0.0
    %150 = vmatpush1.msra.mxu0 0.0
    %151 = vmatprep.subr.mxu0 0.0
    %152 = vmatpush1.msra.mxu0 0.0
    %153 = vmatprep.subr.mxu0 0.0
    %154 = vmatpush1.msra.mxu0 0.0
    %155 = vmatprep.subr.mxu0 0.0
    %156 = vmatpush1.msra.mxu0 0.0
    %157 = vmatprep.subr.mxu0 0.0
    %158 = vmatpush1.msra.mxu0 0.0
    %159 = vmatprep.subr.mxu0 0.0
    %160 = vmatpush1.msra.mxu0 0.0
    %161 = vmatprep.subr.mxu0 0.0
    %162 = vmatpush1.msra.mxu0 0.0
    %163 = vmatprep.subr.mxu0 0.0
    %164 = vmatpush1.msra.mxu0 0.0
    %165 = vmatprep.subr.mxu0 0.0
    %166 = vmatpush1.msra.mxu0 0.0
    %167 = vmatprep.subr.mxu0 0.0
    %168 = vmatpush1.msra.mxu0 0.0
    %169 = vmatprep.subr.mxu0 0.0
    %170 = vmatpush1.msra.mxu0 0.0
    %171 = vmatprep.subr.mxu0 0.0
    %172 = vmatpush1.msra.mxu0 0.0
    %173 = vmatprep.subr.mxu0 0.0
    %174 = vmatpush1.msra.mxu0 0.0
    %175 = vmatprep.subr.mxu0 0.0
    %176 = vmatpush1.msra.mxu0 0.0
    %177 = vmatprep.subr.mxu0 0.0
    %178 = vmatpush1.msra.mxu0 0.0
    %179 = vmatprep.subr.mxu0 0.0
    %180 = vmatpush1.msra.mxu0 0.0
    %181 = vmatprep.subr.mxu0 0.0
    %182 = vmatpush1.msra.mxu0 0.0
    %183 = vmatprep.subr.mxu0 0.0
    %184 = vmatpush1.msra.mxu0 0.0
    %185 = vmatprep.subr.mxu0 0.0
    %186 = vmatpush1.msra.mxu0 0.0
    %187 = vmatprep.subr.mxu0 0.0
    %188 = vmatpush1.msra.mxu0 0.0
    %189 = vmatprep.subr.mxu0 0.0
    %190 = vmatpush1.msra.mxu0 0.0
    %191 = vmatprep.subr.mxu0 0.0
    %192 = vmatpush1.msra.mxu0 0.0
    %193 = vmatprep.subr.mxu0 0.0
    %194 = vmatpush1.msra.mxu0 0.0
    %195 = vmatprep.mubr.f32.mxu0 0.0
    %196 = vmatmul.mubr.f32.gmra.mrb[0].mxu0 %v55
    %v197 = vpop.f32.mrb[0].mxu0
    %v198 = vadd.f32 0.0, %v197
    %v199 = vpop.f32.mrb[0].mxu0
    %200 = vdwg.mxu0
    %v201 = vld [vmem:[#allocation5 + $0x40] sm:$0xff]
    %v202 = vld [vmem:[#allocation5 + $0x48] sm:$0xff]
    %v203 = vld [vmem:[#allocation5 + $0x50] sm:$0xff]
    %v204 = vld [vmem:[#allocation5 + $0x58] sm:$0xff]
    %205 = vmatprep.subr.mxu0 0.0
    %206 = vmatpush1.msra.mxu0 %v201
    %207 = vmatprep.subr.mxu0 0.0
    %208 = vmatpush1.msra.mxu0 %v202
    %209 = vmatprep.subr.mxu0 0.0
    %210 = vmatpush1.msra.mxu0 %v203
    %211 = vmatprep.subr.mxu0 0.0
    %212 = vmatpush1.msra.mxu0 %v204
    %213 = vmatprep.subr.mxu0 0.0
    %214 = vmatpush1.msra.mxu0 0.0
    %215 = vmatprep.subr.mxu0 0.0
    %216 = vmatpush1.msra.mxu0 0.0
    %217 = vmatprep.subr.mxu0 0.0
    %218 = vmatpush1.msra.mxu0 0.0
    %219 = vmatprep.subr.mxu0 0.0
    %220 = vmatpush1.msra.mxu0 0.0
    %221 = vmatprep.subr.mxu0 0.0
    %222 = vmatpush1.msra.mxu0 0.0
    %223 = vmatprep.subr.mxu0 0.0
    %224 = vmatpush1.msra.mxu0 0.0
    %225 = vmatprep.subr.mxu0 0.0
    %226 = vmatpush1.msra.mxu0 0.0
    %227 = vmatprep.subr.mxu0 0.0
    %228 = vmatpush1.msra.mxu0 0.0
    %229 = vmatprep.subr.mxu0 0.0
    %230 = vmatpush1.msra.mxu0 0.0
    %231 = vmatprep.subr.mxu0 0.0
    %232 = vmatpush1.msra.mxu0 0.0
    %233 = vmatprep.subr.mxu0 0.0
    %234 = vmatpush1.msra.mxu0 0.0
    %235 = vmatprep.subr.mxu0 0.0
    %236 = vmatpush1.msra.mxu0 0.0
    %237 = vmatprep.subr.mxu0 0.0
    %238 = vmatpush1.msra.mxu0 0.0
    %239 = vmatprep.subr.mxu0 0.0
    %240 = vmatpush1.msra.mxu0 0.0
    %241 = vmatprep.subr.mxu0 0.0
    %242 = vmatpush1.msra.mxu0 0.0
    %243 = vmatprep.subr.mxu0 0.0
    %244 = vmatpush1.msra.mxu0 0.0
    %245 = vmatprep.subr.mxu0 0.0
    %246 = vmatpush1.msra.mxu0 0.0
    %247 = vmatprep.subr.mxu0 0.0
    %248 = vmatpush1.msra.mxu0 0.0
    %249 = vmatprep.subr.mxu0 0.0
    %250 = vmatpush1.msra.mxu0 0.0
    %251 = vmatprep.subr.mxu0 0.0
    %252 = vmatpush1.msra.mxu0 0.0
    %253 = vmatprep.subr.mxu0 0.0
    %254 = vmatpush1.msra.mxu0 0.0
    %255 = vmatprep.subr.mxu0 0.0
    %256 = vmatpush1.msra.mxu0 0.0
    %257 = vmatprep.subr.mxu0 0.0
    %258 = vmatpush1.msra.mxu0 0.0
    %259 = vmatprep.subr.mxu0 0.0
    %260 = vmatpush1.msra.mxu0 0.0
    %261 = vmatprep.subr.mxu0 0.0
    %262 = vmatpush1.msra.mxu0 0.0
    %263 = vmatprep.subr.mxu0 0.0
    %264 = vmatpush1.msra.mxu0 0.0
    %265 = vmatprep.subr.mxu0 0.0
    %266 = vmatpush1.msra.mxu0 0.0
    %267 = vmatprep.subr.mxu0 0.0
    %268 = vmatpush1.msra.mxu0 0.0
    %269 = vmatprep.mubr.f32.mxu0 0.0
    %270 = vmatmul.mubr.f32.gmra.mrb[0].mxu0 %v55
    %v271 = vpop.f32.mrb[0].mxu0
    %v272 = vadd.f32 0.0, %v271
    %v273 = vpop.f32.mrb[0].mxu0
    %274 = vdwg.mxu0
    %v275 = vld [vmem:[#allocation5 + $0x60] sm:$0xff]
    %v276 = vld [vmem:[#allocation5 + $0x68] sm:$0xff]
    %v277 = vld [vmem:[#allocation5 + $0x70] sm:$0xff]
    %v278 = vld [vmem:[#allocation5 + $0x78] sm:$0xff]
    %279 = vmatprep.subr.mxu0 0.0
    %280 = vmatpush1.msra.mxu0 %v275
    %281 = vmatprep.subr.mxu0 0.0
    %282 = vmatpush1.msra.mxu0 %v276
    %283 = vmatprep.subr.mxu0 0.0
    %284 = vmatpush1.msra.mxu0 %v277
    %285 = vmatprep.subr.mxu0 0.0
    %286 = vmatpush1.msra.mxu0 %v278
    %287 = vmatprep.subr.mxu0 0.0
    %288 = vmatpush1.msra.mxu0 0.0
    %289 = vmatprep.subr.mxu0 0.0
    %290 = vmatpush1.msra.mxu0 0.0
    %291 = vmatprep.subr.mxu0 0.0
    %292 = vmatpush1.msra.mxu0 0.0
    %293 = vmatprep.subr.mxu0 0.0
    %294 = vmatpush1.msra.mxu0 0.0
    %295 = vmatprep.subr.mxu0 0.0
    %296 = vmatpush1.msra.mxu0 0.0
    %297 = vmatprep.subr.mxu0 0.0
    %298 = vmatpush1.msra.mxu0 0.0
    %299 = vmatprep.subr.mxu0 0.0
    %300 = vmatpush1.msra.mxu0 0.0
    %301 = vmatprep.subr.mxu0 0.0
    %302 = vmatpush1.msra.mxu0 0.0
    %303 = vmatprep.subr.mxu0 0.0
    %304 = vmatpush1.msra.mxu0 0.0
    %305 = vmatprep.subr.mxu0 0.0
    %306 = vmatpush1.msra.mxu0 0.0
    %307 = vmatprep.subr.mxu0 0.0
    %308 = vmatpush1.msra.mxu0 0.0
    %309 = vmatprep.subr.mxu0 0.0
    %310 = vmatpush1.msra.mxu0 0.0
    %311 = vmatprep.subr.mxu0 0.0
    %312 = vmatpush1.msra.mxu0 0.0
    %313 = vmatprep.subr.mxu0 0.0
    %314 = vmatpush1.msra.mxu0 0.0
    %315 = vmatprep.subr.mxu0 0.0
    %316 = vmatpush1.msra.mxu0 0.0
    %317 = vmatprep.subr.mxu0 0.0
    %318 = vmatpush1.msra.mxu0 0.0
    %319 = vmatprep.subr.mxu0 0.0
    %320 = vmatpush1.msra.mxu0 0.0
    %321 = vmatprep.subr.mxu0 0.0
    %322 = vmatpush1.msra.mxu0 0.0
    %323 = vmatprep.subr.mxu0 0.0
    %324 = vmatpush1.msra.mxu0 0.0
    %325 = vmatprep.subr.mxu0 0.0
    %326 = vmatpush1.msra.mxu0 0.0
    %327 = vmatprep.subr.mxu0 0.0
    %328 = vmatpush1.msra.mxu0 0.0
    %329 = vmatprep.subr.mxu0 0.0
    %330 = vmatpush1.msra.mxu0 0.0
    %331 = vmatprep.subr.mxu0 0.0
    %332 = vmatpush1.msra.mxu0 0.0
    %333 = vmatprep.subr.mxu0 0.0
    %334 = vmatpush1.msra.mxu0 0.0
    %335 = vmatprep.subr.mxu0 0.0
    %336 = vmatpush1.msra.mxu0 0.0
    %337 = vmatprep.subr.mxu0 0.0
    %338 = vmatpush1.msra.mxu0 0.0
    %339 = vmatprep.subr.mxu0 0.0
    %340 = vmatpush1.msra.mxu0 0.0
    %341 = vmatprep.subr.mxu0 0.0
    %342 = vmatpush1.msra.mxu0 0.0
    %343 = vmatprep.mubr.f32.mxu0 0.0
    %344 = vmatmul.mubr.f32.gmra.mrb[0].mxu0 %v55
    %v345 = vpop.f32.mrb[0].mxu0
    %v346 = vadd.f32 0.0, %v345
    %v347 = vpop.f32.mrb[0].mxu0
    %348 = vdwg.mxu0
    %v349 = vld [vmem:[#allocation5 + $0x80] sm:$0xff]
    %v350 = vld [vmem:[#allocation5 + $0x88] sm:$0xff]
    %v351 = vld [vmem:[#allocation5 + $0x90] sm:$0xff]
    %v352 = vld [vmem:[#allocation5 + $0x98] sm:$0xff]
    %353 = vmatprep.subr.mxu0 0.0
    %354 = vmatpush1.msra.mxu0 %v349
    %355 = vmatprep.subr.mxu0 0.0
    %356 = vmatpush1.msra.mxu0 %v350
    %357 = vmatprep.subr.mxu0 0.0
    %358 = vmatpush1.msra.mxu0 %v351
    %359 = vmatprep.subr.mxu0 0.0
    %360 = vmatpush1.msra.mxu0 %v352
    %361 = vmatprep.subr.mxu0 0.0
    %362 = vmatpush1.msra.mxu0 0.0
    %363 = vmatprep.subr.mxu0 0.0
    %364 = vmatpush1.msra.mxu0 0.0
    %365 = vmatprep.subr.mxu0 0.0
    %366 = vmatpush1.msra.mxu0 0.0
    %367 = vmatprep.subr.mxu0 0.0
    %368 = vmatpush1.msra.mxu0 0.0
    %369 = vmatprep.subr.mxu0 0.0
    %370 = vmatpush1.msra.mxu0 0.0
    %371 = vmatprep.subr.mxu0 0.0
    %372 = vmatpush1.msra.mxu0 0.0
    %373 = vmatprep.subr.mxu0 0.0
    %374 = vmatpush1.msra.mxu0 0.0
    %375 = vmatprep.subr.mxu0 0.0
    %376 = vmatpush1.msra.mxu0 0.0
    %377 = vmatprep.subr.mxu0 0.0
    %378 = vmatpush1.msra.mxu0 0.0
    %379 = vmatprep.subr.mxu0 0.0
    %380 = vmatpush1.msra.mxu0 0.0
    %381 = vmatprep.subr.mxu0 0.0
    %382 = vmatpush1.msra.mxu0 0.0
    %383 = vmatprep.subr.mxu0 0.0
    %384 = vmatpush1.msra.mxu0 0.0
    %385 = vmatprep.subr.mxu0 0.0
    %386 = vmatpush1.msra.mxu0 0.0
    %387 = vmatprep.subr.mxu0 0.0
    %388 = vmatpush1.msra.mxu0 0.0
    %389 = vmatprep.subr.mxu0 0.0
    %390 = vmatpush1.msra.mxu0 0.0
    %391 = vmatprep.subr.mxu0 0.0
    %392 = vmatpush1.msra.mxu0 0.0
    %393 = vmatprep.subr.mxu0 0.0
    %394 = vmatpush1.msra.mxu0 0.0
    %395 = vmatprep.subr.mxu0 0.0
    %396 = vmatpush1.msra.mxu0 0.0
    %397 = vmatprep.subr.mxu0 0.0
    %398 = vmatpush1.msra.mxu0 0.0
    %399 = vmatprep.subr.mxu0 0.0
    %400 = vmatpush1.msra.mxu0 0.0
    %401 = vmatprep.subr.mxu0 0.0
    %402 = vmatpush1.msra.mxu0 0.0
    %403 = vmatprep.subr.mxu0 0.0
    %404 = vmatpush1.msra.mxu0 0.0
    %405 = vmatprep.subr.mxu0 0.0
    %406 = vmatpush1.msra.mxu0 0.0
    %407 = vmatprep.subr.mxu0 0.0
    %408 = vmatpush1.msra.mxu0 0.0
    %409 = vmatprep.subr.mxu0 0.0
    %410 = vmatpush1.msra.mxu0 0.0
    %411 = vmatprep.subr.mxu0 0.0
    %412 = vmatpush1.msra.mxu0 0.0
    %413 = vmatprep.subr.mxu0 0.0
    %414 = vmatpush1.msra.mxu0 0.0
    %415 = vmatprep.subr.mxu0 0.0
    %416 = vmatpush1.msra.mxu0 0.0
    %417 = vmatprep.mubr.f32.mxu0 0.0
    %418 = vmatmul.mubr.f32.gmra.mrb[0].mxu0 %v55
    %v419 = vpop.f32.mrb[0].mxu0
    %v420 = vadd.f32 0.0, %v419
    %v421 = vpop.f32.mrb[0].mxu0
    %422 = vdwg.mxu0
    %v423 = vld [vmem:[#allocation5 + $0xa0] sm:$0xff]
    %v424 = vld [vmem:[#allocation5 + $0xa8] sm:$0xff]
    %v425 = vld [vmem:[#allocation5 + $0xb0] sm:$0xff]
    %v426 = vld [vmem:[#allocation5 + $0xb8] sm:$0xff]
    %427 = vmatprep.subr.mxu0 0.0
    %428 = vmatpush1.msra.mxu0 %v423
    %429 = vmatprep.subr.mxu0 0.0
    %430 = vmatpush1.msra.mxu0 %v424
    %431 = vmatprep.subr.mxu0 0.0
    %432 = vmatpush1.msra.mxu0 %v425
    %433 = vmatprep.subr.mxu0 0.0
    %434 = vmatpush1.msra.mxu0 %v426
    %435 = vmatprep.subr.mxu0 0.0
    %436 = vmatpush1.msra.mxu0 0.0
    %437 = vmatprep.subr.mxu0 0.0
    %438 = vmatpush1.msra.mxu0 0.0
    %439 = vmatprep.subr.mxu0 0.0
    %440 = vmatpush1.msra.mxu0 0.0
    %441 = vmatprep.subr.mxu0 0.0
    %442 = vmatpush1.msra.mxu0 0.0
    %443 = vmatprep.subr.mxu0 0.0
    %444 = vmatpush1.msra.mxu0 0.0
    %445 = vmatprep.subr.mxu0 0.0
    %446 = vmatpush1.msra.mxu0 0.0
    %447 = vmatprep.subr.mxu0 0.0
    %448 = vmatpush1.msra.mxu0 0.0
    %449 = vmatprep.subr.mxu0 0.0
    %450 = vmatpush1.msra.mxu0 0.0
    %451 = vmatprep.subr.mxu0 0.0
    %452 = vmatpush1.msra.mxu0 0.0
    %453 = vmatprep.subr.mxu0 0.0
    %454 = vmatpush1.msra.mxu0 0.0
    %455 = vmatprep.subr.mxu0 0.0
    %456 = vmatpush1.msra.mxu0 0.0
    %457 = vmatprep.subr.mxu0 0.0
    %458 = vmatpush1.msra.mxu0 0.0
    %459 = vmatprep.subr.mxu0 0.0
    %460 = vmatpush1.msra.mxu0 0.0
    %461 = vmatprep.subr.mxu0 0.0
    %462 = vmatpush1.msra.mxu0 0.0
    %463 = vmatprep.subr.mxu0 0.0
    %464 = vmatpush1.msra.mxu0 0.0
    %465 = vmatprep.subr.mxu0 0.0
    %466 = vmatpush1.msra.mxu0 0.0
    %467 = vmatprep.subr.mxu0 0.0
    %468 = vmatpush1.msra.mxu0 0.0
    %469 = vmatprep.subr.mxu0 0.0
    %470 = vmatpush1.msra.mxu0 0.0
    %471 = vmatprep.subr.mxu0 0.0
    %472 = vmatpush1.msra.mxu0 0.0
    %473 = vmatprep.subr.mxu0 0.0
    %474 = vmatpush1.msra.mxu0 0.0
    %475 = vmatprep.subr.mxu0 0.0
    %476 = vmatpush1.msra.mxu0 0.0
    %477 = vmatprep.subr.mxu0 0.0
    %478 = vmatpush1.msra.mxu0 0.0
    %479 = vmatprep.subr.mxu0 0.0
    %480 = vmatpush1.msra.mxu0 0.0
    %481 = vmatprep.subr.mxu0 0.0
    %482 = vmatpush1.msra.mxu0 0.0
    %483 = vmatprep.subr.mxu0 0.0
    %484 = vmatpush1.msra.mxu0 0.0
    %485 = vmatprep.subr.mxu0 0.0
    %486 = vmatpush1.msra.mxu0 0.0
    %487 = vmatprep.subr.mxu0 0.0
    %488 = vmatpush1.msra.mxu0 0.0
    %489 = vmatprep.subr.mxu0 0.0
    %490 = vmatpush1.msra.mxu0 0.0
    %491 = vmatprep.mubr.f32.mxu0 0.0
    %492 = vmatmul.mubr.f32.gmra.mrb[0].mxu0 %v55
    %v493 = vpop.f32.mrb[0].mxu0
    %v494 = vadd.f32 0.0, %v493
    %v495 = vpop.f32.mrb[0].mxu0
    %496 = vdwg.mxu0
    %v497 = vld [vmem:[#allocation5 + $0xc0] sm:$0xff]
    %v498 = vld [vmem:[#allocation5 + $0xc8] sm:$0xff]
    %v499 = vld [vmem:[#allocation5 + $0xd0] sm:$0xff]
    %v500 = vld [vmem:[#allocation5 + $0xd8] sm:$0xff]
    %501 = vmatprep.subr.mxu0 0.0
    %502 = vmatpush1.msra.mxu0 %v497
    %503 = vmatprep.subr.mxu0 0.0
    %504 = vmatpush1.msra.mxu0 %v498
    %505 = vmatprep.subr.mxu0 0.0
    %506 = vmatpush1.msra.mxu0 %v499
    %507 = vmatprep.subr.mxu0 0.0
    %508 = vmatpush1.msra.mxu0 %v500
    %509 = vmatprep.subr.mxu0 0.0
    %510 = vmatpush1.msra.mxu0 0.0
    %511 = vmatprep.subr.mxu0 0.0
    %512 = vmatpush1.msra.mxu0 0.0
    %513 = vmatprep.subr.mxu0 0.0
    %514 = vmatpush1.msra.mxu0 0.0
    %515 = vmatprep.subr.mxu0 0.0
    %516 = vmatpush1.msra.mxu0 0.0
    %517 = vmatprep.subr.mxu0 0.0
    %518 = vmatpush1.msra.mxu0 0.0
    %519 = vmatprep.subr.mxu0 0.0
    %520 = vmatpush1.msra.mxu0 0.0
    %521 = vmatprep.subr.mxu0 0.0
    %522 = vmatpush1.msra.mxu0 0.0
    %523 = vmatprep.subr.mxu0 0.0
    %524 = vmatpush1.msra.mxu0 0.0
    %525 = vmatprep.subr.mxu0 0.0
    %526 = vmatpush1.msra.mxu0 0.0
    %527 = vmatprep.subr.mxu0 0.0
    %528 = vmatpush1.msra.mxu0 0.0
    %529 = vmatprep.subr.mxu0 0.0
    %530 = vmatpush1.msra.mxu0 0.0
    %531 = vmatprep.subr.mxu0 0.0
    %532 = vmatpush1.msra.mxu0 0.0
    %533 = vmatprep.subr.mxu0 0.0
    %534 = vmatpush1.msra.mxu0 0.0
    %535 = vmatprep.subr.mxu0 0.0
    %536 = vmatpush1.msra.mxu0 0.0
    %537 = vmatprep.subr.mxu0 0.0
    %538 = vmatpush1.msra.mxu0 0.0
    %539 = vmatprep.subr.mxu0 0.0
    %540 = vmatpush1.msra.mxu0 0.0
    %541 = vmatprep.subr.mxu0 0.0
    %542 = vmatpush1.msra.mxu0 0.0
    %543 = vmatprep.subr.mxu0 0.0
    %544 = vmatpush1.msra.mxu0 0.0
    %545 = vmatprep.subr.mxu0 0.0
    %546 = vmatpush1.msra.mxu0 0.0
    %547 = vmatprep.subr.mxu0 0.0
    %548 = vmatpush1.msra.mxu0 0.0
    %549 = vmatprep.subr.mxu0 0.0
    %550 = vmatpush1.msra.mxu0 0.0
    %551 = vmatprep.subr.mxu0 0.0
    %552 = vmatpush1.msra.mxu0 0.0
    %553 = vmatprep.subr.mxu0 0.0
    %554 = vmatpush1.msra.mxu0 0.0
    %555 = vmatprep.subr.mxu0 0.0
    %556 = vmatpush1.msra.mxu0 0.0
    %557 = vmatprep.subr.mxu0 0.0
    %558 = vmatpush1.msra.mxu0 0.0
    %559 = vmatprep.subr.mxu0 0.0
    %560 = vmatpush1.msra.mxu0 0.0
    %561 = vmatprep.subr.mxu0 0.0
    %562 = vmatpush1.msra.mxu0 0.0
    %563 = vmatprep.subr.mxu0 0.0
    %564 = vmatpush1.msra.mxu0 0.0
    %565 = vmatprep.mubr.f32.mxu0 0.0
    %566 = vmatmul.mubr.f32.gmra.mrb[0].mxu0 %v55
    %v567 = vpop.f32.mrb[0].mxu0
    %v568 = vadd.f32 0.0, %v567
    %v569 = vpop.f32.mrb[0].mxu0
    %570 = vdwg.mxu0
    %v571 = vld [vmem:[#allocation5 + $0xe0] sm:$0xff]
    %v572 = vld [vmem:[#allocation5 + $0xe8] sm:$0xff]
    %v573 = vld [vmem:[#allocation5 + $0xf0] sm:$0xff]
    %v574 = vld [vmem:[#allocation5 + $0xf8] sm:$0xff]
    %v575 = vld [vmem:[#allocation5 + $0x100] sm:$0xff]
    %v576 = vld [vmem:[#allocation5 + $0x108] sm:$0xff]
    %v577 = vld [vmem:[#allocation5 + $0x110] sm:$0xff]
    %v578 = vld [vmem:[#allocation5 + $0x118] sm:$0xff]
    %vm579 = vcmask 457728
    %v581 = vsel %vm579, %v571, 0
    %v584 = vsel %vm579, %v572, 0
    %v587 = vsel %vm579, %v573, 0
    %v590 = vsel %vm579, %v574, 0
    %592 = vmatprep.subr.mxu0 0.0
    %593 = vmatpush1.msra.mxu0 %v124
    %594 = vmatprep.subr.mxu0 0.0
    %595 = vmatpush1.msra.mxu0 %v198
    %596 = vmatprep.subr.mxu0 0.0
    %597 = vmatpush1.msra.mxu0 %v272
    %598 = vmatprep.subr.mxu0 0.0
    %599 = vmatpush1.msra.mxu0 %v346
    %600 = vmatprep.subr.mxu0 0.0
    %601 = vmatpush1.msra.mxu0 %v420
    %602 = vmatprep.subr.mxu0 0.0
    %603 = vmatpush1.msra.mxu0 %v494
    %604 = vmatprep.subr.mxu0 0.0
    %605 = vmatpush1.msra.mxu0 %v568
    %606 = vmatprep.subr.mxu0 0.0
    %607 = vmatpush1.msra.mxu0 0.0
    %608 = vmatprep.subr.mxu0 0.0
    %609 = vmatpush1.msra.mxu0 0.0
    %610 = vmatprep.subr.mxu0 0.0
    %611 = vmatpush1.msra.mxu0 0.0
    %612 = vmatprep.subr.mxu0 0.0
    %613 = vmatpush1.msra.mxu0 0.0
    %614 = vmatprep.subr.mxu0 0.0
    %615 = vmatpush1.msra.mxu0 0.0
    %616 = vmatprep.subr.mxu0 0.0
    %617 = vmatpush1.msra.mxu0 0.0
    %618 = vmatprep.subr.mxu0 0.0
    %619 = vmatpush1.msra.mxu0 0.0
    %620 = vmatprep.subr.mxu0 0.0
    %621 = vmatpush1.msra.mxu0 0.0
    %622 = vmatprep.subr.mxu0 0.0
    %623 = vmatpush1.msra.mxu0 0.0
    %624 = vmatprep.subr.mxu0 0.0
    %625 = vmatpush1.msra.mxu0 0.0
    %626 = vmatprep.subr.mxu0 0.0
    %627 = vmatpush1.msra.mxu0 0.0
    %628 = vmatprep.subr.mxu0 0.0
    %629 = vmatpush1.msra.mxu0 0.0
    %630 = vmatprep.subr.mxu0 0.0
    %631 = vmatpush1.msra.mxu0 0.0
    %632 = vmatprep.subr.mxu0 0.0
    %633 = vmatpush1.msra.mxu0 0.0
    %634 = vmatprep.subr.mxu0 0.0
    %635 = vmatpush1.msra.mxu0 0.0
    %636 = vmatprep.subr.mxu0 0.0
    %637 = vmatpush1.msra.mxu0 0.0
    %638 = vmatprep.subr.mxu0 0.0
    %639 = vmatpush1.msra.mxu0 0.0
    %640 = vmatprep.subr.mxu0 0.0
    %641 = vmatpush1.msra.mxu0 0.0
    %642 = vmatprep.subr.mxu0 0.0
    %643 = vmatpush1.msra.mxu0 0.0
    %644 = vmatprep.subr.mxu0 0.0
    %645 = vmatpush1.msra.mxu0 0.0
    %646 = vmatprep.subr.mxu0 0.0
    %647 = vmatpush1.msra.mxu0 0.0
    %648 = vmatprep.subr.mxu0 0.0
    %649 = vmatpush1.msra.mxu0 0.0
    %650 = vmatprep.subr.mxu0 0.0
    %651 = vmatpush1.msra.mxu0 0.0
    %652 = vmatprep.subr.mxu0 0.0
    %653 = vmatpush1.msra.mxu0 0.0
    %654 = vmatprep.subr.mxu0 0.0
    %655 = vmatpush1.msra.mxu0 0.0
    %656 = vmatprep.mubr.f32.mxu0 0.0
    %657 = vmatmul.mubr.f32.gmra.mrb[0].mxu0 %v581
    %v658 = vpop.f32.mrb[0].mxu0
    %v659 = vadd.f32 %v575, %v658
    %v660 = vpop.f32.mrb[0].mxu0
    %661 = vmatprep.mubr.f32.mxu0 0.0
    %662 = vmatmul.mubr.f32.gmra.mrb[0].mxu0 %v584
    %v663 = vpop.f32.mrb[0].mxu0
    %v664 = vadd.f32 %v576, %v663
    %v665 = vpop.f32.mrb[0].mxu0
    %666 = vmatprep.mubr.f32.mxu0 0.0
    %667 = vmatmul.mubr.f32.gmra.mrb[0].mxu0 %v587
    %v668 = vpop.f32.mrb[0].mxu0
    %v669 = vadd.f32 %v577, %v668
    %v670 = vpop.f32.mrb[0].mxu0
    %671 = vmatprep.mubr.f32.mxu0 0.0
    %672 = vmatmul.mubr.f32.gmra.mrb[0].mxu0 %v590
    %v673 = vpop.f32.mrb[0].mxu0
    %v674 = vadd.f32 %v578, %v673
    %v675 = vpop.f32.mrb[0].mxu0
    %676 = vdwg.mxu0
    %v677 = vmul.f32 %v659, 1.442695
    %v678 = vpow.pop %v677
    %v679 = vmul.f32 %v664, 1.442695
    %v680 = vpow.pop %v679
    %v681 = vand.u32 2147483647, %v669
    %vm682 = vcmp.le.f32.partialorder %v681, 0.7853982
    %vm683 = vcmp.lt.s32.totalorder %v669, 0
    %v684 = vand.u32 %v669, 2139095040
    %v685 = vshrl.u32 %v684, 23
    %v686 = vsub.s32 %v685, 127
    %v687 = vand.u32 2147483647, %v669
    %v688 = vand.u32 %v687, 8388607
    %v689 = vor.u32 %v688, 8388608
    %v690 = vsub.s32 0, %v689
    %v691 = vadd.s32 %v686, 1
    %vm692 = vcmp.gt.s32.totalorder %v691, 0
    %v693 = vsel %vm692, %v691, 0
    %v694 = vshrl.u32 %v693, 5
    %v695 = vand.u32 %v693, 31
    %v696 = vsub.s32 32, %v695
    %v697 = vshrl.u32 683565275, %v696
    %v698 = vshll.u32 683565275, %v695
    %v699 = vshrl.u32 2475754826, %v696
    %v700 = vor.u32 %v698, %v699
    %v701 = vshll.u32 2475754826, %v695
    %v702 = vshrl.u32 2131351028, %v696
    %v703 = vor.u32 %v701, %v702
    %v704 = vshll.u32 2131351028, %v695
    %v705 = vshrl.u32 2102212464, %v696
    %v706 = vor.u32 %v704, %v705
    %v707 = vshll.u32 2102212464, %v695
    %v708 = vshrl.u32 920167782, %v696
    %v709 = vor.u32 %v707, %v708
    %v710 = vshll.u32 920167782, %v695
    %v711 = vshrl.u32 1326507024, %v696
    %v712 = vor.u32 %v710, %v711
    %vm713 = vcmp.lt.s32.totalorder %v694, 1
    %vm714 = vcmp.lt.s32.totalorder %v694, 2
    %vm715 = vcmp.lt.s32.totalorder %v694, 3
    %vm716 = vcmp.lt.s32.totalorder %v694, 4
    %v717 = vsel %vm713, %v697, %v700
    %v718 = vsel %vm716, %v706, 2102212464
    %v719 = vsel %vm715, %v703, %v718
    %v720 = vsel %vm714, %v717, %v719
    %v721 = vsel %vm713, %v700, %v703
    %v722 = vsel %vm716, %v709, 920167782
    %v723 = vsel %vm715, %v706, %v722
    %v724 = vsel %vm714, %v721, %v723
    %v725 = vsel %vm713, %v703, %v706
    %v726 = vsel %vm716, %v712, 1326507024
    %v727 = vsel %vm715, %v709, %v726
    %v728 = vsel %vm714, %v725, %v727
    %v729 = vshll.u32 %v689, 8
    %v730 = vmul.u32.u64.compose %v729, %v728
    %v731 = vextract.low.u32 %v730
    %v732 = vextract.high.u32 %v730
    %v733 = vmul.u32.u64.compose %v729, %v724
    %v734 = vextract.low.u32 %v733
    %v735 = vextract.high.u32 %v733
    %v736 = vmul.u32 %v729, %v720
    %v737 = vadd.s32 %v732, %v734
    %vm738 = vc.u32 %v732, %v734
    %v739 = vadd.s32 %v735, 1
    %v740 = vsel %vm738, %v739, %v735
    %v741 = vadd.s32 %v736, %v740
    %v742 = vadd.s32 %v741, 536870912
    %v743 = vshrl.u32 %v742, 30
    %v744 = vshll.u32 %v743, 30
    %v745 = vsub.s32 %v741, %v744
    %vm746 = vcmp.lt.s32.totalorder %v745, 0
    %v747 = vsub.s32 0, %v745
    %v748 = vsel %vm746, %v747, %v745
    %v749 = vclz %v748
    %v750 = vsub.s32 %v749, 2
    %vm751 = vcmp.gt.s32.totalorder 0, %v750
    %v752 = vsel %vm751, 0, %v750
    %v753 = vsub.s32 32, %v752
    %v754 = vshll.u32 %v745, %v752
    %v755 = vshrl.u32 %v737, %v753
    %v756 = vor.u32 %v754, %v755
    %v757 = vsub.s32 4294967266, %v752
    %v758 = vadd.s32 %v757, 127
    %v759 = vshll.u32 %v758, 23
    %v760 = vor.u32 4788187, %v759
    %v761 = vand.u32 2147483647, %v760
    %v763 = vcvt.s32.f32 %v756
    %v764 = vmul.f32 %v763, %v761
    %v765 = vxor.u32 %v764, 2147483648
    %v766 = vsel %vm683, %v765, %v764
    %v767 = vsub.s32 4, %v743
    %v768 = vsel %vm683, %v767, %v743
    %v769 = vsel %vm682, %v669, %v766
    %v770 = vsel %vm682, 0, %v768
    %v771 = vcosq.f32.pop %v769
    %v772 = vsinq.f32.pop %v769
    %vm773 = vweird.f32 %v669
    %v774 = vadd.s32 %v770, 3
    %v775 = vand.u32 %v774, 3
    %vm776 = vcmp.lt.s32.totalorder %v775, 2
    %vm777 = vcmp.eq.s32.totalorder %v775, 0
    %v778 = vxor.u32 %v772, 2147483648
    %v779 = vsel %vm777, %v771, %v778
    %vm780 = vcmp.eq.s32.totalorder %v775, 2
    %v781 = vxor.u32 %v771, 2147483648
    %v782 = vsel %vm780, %v781, %v772
    %v783 = vsel %vm776, %v779, %v782
    %v784 = vsel %vm773, nan, %v783
    %v785 = vand.u32 2147483647, %v674
    %vm786 = vcmp.le.f32.partialorder %v785, 0.7853982
    %vm787 = vcmp.lt.s32.totalorder %v674, 0
    %v788 = vand.u32 %v674, 2139095040
    %v789 = vshrl.u32 %v788, 23
    %v790 = vsub.s32 %v789, 127
    %v791 = vand.u32 2147483647, %v674
    %v792 = vand.u32 %v791, 8388607
    %v793 = vor.u32 %v792, 8388608
    %v794 = vsub.s32 0, %v793
    %v795 = vadd.s32 %v790, 1
    %vm796 = vcmp.gt.s32.totalorder %v795, 0
    %v797 = vsel %vm796, %v795, 0
    %v798 = vshrl.u32 %v797, 5
    %v799 = vand.u32 %v797, 31
    %v800 = vsub.s32 32, %v799
    %v801 = vshrl.u32 683565275, %v800
    %v802 = vshll.u32 683565275, %v799
    %v803 = vshrl.u32 2475754826, %v800
    %v804 = vor.u32 %v802, %v803
    %v805 = vshll.u32 2475754826, %v799
    %v806 = vshrl.u32 2131351028, %v800
    %v807 = vor.u32 %v805, %v806
    %v808 = vshll.u32 2131351028, %v799
    %v809 = vshrl.u32 2102212464, %v800
    %v810 = vor.u32 %v808, %v809
    %v811 = vshll.u32 2102212464, %v799
    %v812 = vshrl.u32 920167782, %v800
    %v813 = vor.u32 %v811, %v812
    %v814 = vshll.u32 920167782, %v799
    %v815 = vshrl.u32 1326507024, %v800
    %v816 = vor.u32 %v814, %v815
    %vm817 = vcmp.lt.s32.totalorder %v798, 1
    %vm818 = vcmp.lt.s32.totalorder %v798, 2
    %vm819 = vcmp.lt.s32.totalorder %v798, 3
    %vm820 = vcmp.lt.s32.totalorder %v798, 4
    %v821 = vsel %vm817, %v801, %v804
    %v822 = vsel %vm820, %v810, 2102212464
    %v823 = vsel %vm819, %v807, %v822
    %v824 = vsel %vm818, %v821, %v823
    %v825 = vsel %vm817, %v804, %v807
    %v826 = vsel %vm820, %v813, 920167782
    %v827 = vsel %vm819, %v810, %v826
    %v828 = vsel %vm818, %v825, %v827
    %v829 = vsel %vm817, %v807, %v810
    %v830 = vsel %vm820, %v816, 1326507024
    %v831 = vsel %vm819, %v813, %v830
    %v832 = vsel %vm818, %v829, %v831
    %v833 = vshll.u32 %v793, 8
    %v834 = vmul.u32.u64.compose %v833, %v832
    %v835 = vextract.low.u32 %v834
    %v836 = vextract.high.u32 %v834
    %v837 = vmul.u32.u64.compose %v833, %v828
    %v838 = vextract.low.u32 %v837
    %v839 = vextract.high.u32 %v837
    %v840 = vmul.u32 %v833, %v824
    %v841 = vadd.s32 %v836, %v838
    %vm842 = vc.u32 %v836, %v838
    %v843 = vadd.s32 %v839, 1
    %v844 = vsel %vm842, %v843, %v839
    %v845 = vadd.s32 %v840, %v844
    %v846 = vadd.s32 %v845, 536870912
    %v847 = vshrl.u32 %v846, 30
    %v848 = vshll.u32 %v847, 30
    %v849 = vsub.s32 %v845, %v848
    %vm850 = vcmp.lt.s32.totalorder %v849, 0
    %v851 = vsub.s32 0, %v849
    %v852 = vsel %vm850, %v851, %v849
    %v853 = vclz %v852
    %v854 = vsub.s32 %v853, 2
    %vm855 = vcmp.gt.s32.totalorder 0, %v854
    %v856 = vsel %vm855, 0, %v854
    %v857 = vsub.s32 32, %v856
    %v858 = vshll.u32 %v849, %v856
    %v859 = vshrl.u32 %v841, %v857
    %v860 = vor.u32 %v858, %v859
    %v861 = vsub.s32 4294967266, %v856
    %v862 = vadd.s32 %v861, 127
    %v863 = vshll.u32 %v862, 23
    %v864 = vor.u32 4788187, %v863
    %v865 = vand.u32 2147483647, %v864
    %v867 = vcvt.s32.f32 %v860
    %v868 = vmul.f32 %v867, %v865
    %v869 = vxor.u32 %v868, 2147483648
    %v870 = vsel %vm787, %v869, %v868
    %v871 = vsub.s32 4, %v847
    %v872 = vsel %vm787, %v871, %v847
    %v873 = vsel %vm786, %v674, %v870
    %v874 = vsel %vm786, 0, %v872
    %v875 = vcosq.f32.pop %v873
    %v876 = vsinq.f32.pop %v873
    %vm877 = vweird.f32 %v674
    %v878 = vadd.s32 %v874, 3
    %v879 = vand.u32 %v878, 3
    %vm880 = vcmp.lt.s32.totalorder %v879, 2
    %vm881 = vcmp.eq.s32.totalorder %v879, 0
    %v882 = vxor.u32 %v876, 2147483648
    %v883 = vsel %vm881, %v875, %v882
    %vm884 = vcmp.eq.s32.totalorder %v879, 2
    %v885 = vxor.u32 %v875, 2147483648
    %v886 = vsel %vm884, %v885, %v876
    %v887 = vsel %vm880, %v883, %v886
    %v888 = vsel %vm877, nan, %v887
    %v889 = vand.u32 2147483647, %v784
    %vm890 = vcmp.le.f32.partialorder %v889, 0.7853982
    %vm891 = vcmp.lt.s32.totalorder %v784, 0
    %v892 = vand.u32 %v784, 2139095040
    %v893 = vshrl.u32 %v892, 23
    %v894 = vsub.s32 %v893, 127
    %v895 = vand.u32 2147483647, %v784
    %v896 = vand.u32 %v895, 8388607
    %v897 = vor.u32 %v896, 8388608
    %v898 = vsub.s32 0, %v897
    %v899 = vadd.s32 %v894, 1
    %vm900 = vcmp.gt.s32.totalorder %v899, 0
    %v901 = vsel %vm900, %v899, 0
    %v902 = vshrl.u32 %v901, 5
    %v903 = vand.u32 %v901, 31
    %v904 = vsub.s32 32, %v903
    %v905 = vshrl.u32 683565275, %v904
    %v906 = vshll.u32 683565275, %v903
    %v907 = vshrl.u32 2475754826, %v904
    %v908 = vor.u32 %v906, %v907
    %v909 = vshll.u32 2475754826, %v903
    %v910 = vshrl.u32 2131351028, %v904
    %v911 = vor.u32 %v909, %v910
    %v912 = vshll.u32 2131351028, %v903
    %v913 = vshrl.u32 2102212464, %v904
    %v914 = vor.u32 %v912, %v913
    %v915 = vshll.u32 2102212464, %v903
    %v916 = vshrl.u32 920167782, %v904
    %v917 = vor.u32 %v915, %v916
    %v918 = vshll.u32 920167782, %v903
    %v919 = vshrl.u32 1326507024, %v904
    %v920 = vor.u32 %v918, %v919
    %vm921 = vcmp.lt.s32.totalorder %v902, 1
    %vm922 = vcmp.lt.s32.totalorder %v902, 2
    %vm923 = vcmp.lt.s32.totalorder %v902, 3
    %vm924 = vcmp.lt.s32.totalorder %v902, 4
    %v925 = vsel %vm921, %v905, %v908
    %v926 = vsel %vm924, %v914, 2102212464
    %v927 = vsel %vm923, %v911, %v926
    %v928 = vsel %vm922, %v925, %v927
    %v929 = vsel %vm921, %v908, %v911
    %v930 = vsel %vm924, %v917, 920167782
    %v931 = vsel %vm923, %v914, %v930
    %v932 = vsel %vm922, %v929, %v931
    %v933 = vsel %vm921, %v911, %v914
    %v934 = vsel %vm924, %v920, 1326507024
    %v935 = vsel %vm923, %v917, %v934
    %v936 = vsel %vm922, %v933, %v935
    %v937 = vshll.u32 %v897, 8
    %v938 = vmul.u32.u64.compose %v937, %v936
    %v939 = vextract.low.u32 %v938
    %v940 = vextract.high.u32 %v938
    %v941 = vmul.u32.u64.compose %v937, %v932
    %v942 = vextract.low.u32 %v941
    %v943 = vextract.high.u32 %v941
    %v944 = vmul.u32 %v937, %v928
    %v945 = vadd.s32 %v940, %v942
    %vm946 = vc.u32 %v940, %v942
    %v947 = vadd.s32 %v943, 1
    %v948 = vsel %vm946, %v947, %v943
    %v949 = vadd.s32 %v944, %v948
    %v950 = vadd.s32 %v949, 536870912
    %v951 = vshrl.u32 %v950, 30
    %v952 = vshll.u32 %v951, 30
    %v953 = vsub.s32 %v949, %v952
    %vm954 = vcmp.lt.s32.totalorder %v953, 0
    %v955 = vsub.s32 0, %v953
    %v956 = vsel %vm954, %v955, %v953
    %v957 = vclz %v956
    %v958 = vsub.s32 %v957, 2
    %vm959 = vcmp.gt.s32.totalorder 0, %v958
    %v960 = vsel %vm959, 0, %v958
    %v961 = vsub.s32 32, %v960
    %v962 = vshll.u32 %v953, %v960
    %v963 = vshrl.u32 %v945, %v961
    %v964 = vor.u32 %v962, %v963
    %v965 = vsub.s32 4294967266, %v960
    %v966 = vadd.s32 %v965, 127
    %v967 = vshll.u32 %v966, 23
    %v968 = vor.u32 4788187, %v967
    %v969 = vand.u32 2147483647, %v968
    %v971 = vcvt.s32.f32 %v964
    %v972 = vmul.f32 %v971, %v969
    %v973 = vxor.u32 %v972, 2147483648
    %v974 = vsel %vm891, %v973, %v972
    %v975 = vsub.s32 4, %v951
    %v976 = vsel %vm891, %v975, %v951
    %v977 = vsel %vm890, %v784, %v974
    %v978 = vsel %vm890, 0, %v976
    %v979 = vcosq.f32.pop %v977
    %v980 = vsinq.f32.pop %v977
    %vm981 = vweird.f32 %v784
    %v982 = vand.u32 %v978, 3
    %vm983 = vcmp.lt.s32.totalorder %v982, 2
    %vm984 = vcmp.eq.s32.totalorder %v982, 0
    %v985 = vxor.u32 %v980, 2147483648
    %v986 = vsel %vm984, %v979, %v985
    %vm987 = vcmp.eq.s32.totalorder %v982, 2
    %v988 = vxor.u32 %v979, 2147483648
    %v989 = vsel %vm987, %v988, %v980
    %v990 = vsel %vm983, %v986, %v989
    %v991 = vsel %vm981, nan, %v990
    %v992 = vand.u32 2147483647, %v888
    %vm993 = vcmp.le.f32.partialorder %v992, 0.7853982
    %vm994 = vcmp.lt.s32.totalorder %v888, 0
    %v995 = vand.u32 %v888, 2139095040
    %v996 = vshrl.u32 %v995, 23
    %v997 = vsub.s32 %v996, 127
    %v998 = vand.u32 2147483647, %v888
    %v999 = vand.u32 %v998, 8388607
    %v1000 = vor.u32 %v999, 8388608
    %v1001 = vsub.s32 0, %v1000
    %v1002 = vadd.s32 %v997, 1
    %vm1003 = vcmp.gt.s32.totalorder %v1002, 0
    %v1004 = vsel %vm1003, %v1002, 0
    %v1005 = vshrl.u32 %v1004, 5
    %v1006 = vand.u32 %v1004, 31
    %v1007 = vsub.s32 32, %v1006
    %v1008 = vshrl.u32 683565275, %v1007
    %v1009 = vshll.u32 683565275, %v1006
    %v1010 = vshrl.u32 2475754826, %v1007
    %v1011 = vor.u32 %v1009, %v1010
    %v1012 = vshll.u32 2475754826, %v1006
    %v1013 = vshrl.u32 2131351028, %v1007
    %v1014 = vor.u32 %v1012, %v1013
    %v1015 = vshll.u32 2131351028, %v1006
    %v1016 = vshrl.u32 2102212464, %v1007
    %v1017 = vor.u32 %v1015, %v1016
    %v1018 = vshll.u32 2102212464, %v1006
    %v1019 = vshrl.u32 920167782, %v1007
    %v1020 = vor.u32 %v1018, %v1019
    %v1021 = vshll.u32 920167782, %v1006
    %v1022 = vshrl.u32 1326507024, %v1007
    %v1023 = vor.u32 %v1021, %v1022
    %vm1024 = vcmp.lt.s32.totalorder %v1005, 1
    %vm1025 = vcmp.lt.s32.totalorder %v1005, 2
    %vm1026 = vcmp.lt.s32.totalorder %v1005, 3
    %vm1027 = vcmp.lt.s32.totalorder %v1005, 4
    %v1028 = vsel %vm1024, %v1008, %v1011
    %v1029 = vsel %vm1027, %v1017, 2102212464
    %v1030 = vsel %vm1026, %v1014, %v1029
    %v1031 = vsel %vm1025, %v1028, %v1030
    %v1032 = vsel %vm1024, %v1011, %v1014
    %v1033 = vsel %vm1027, %v1020, 920167782
    %v1034 = vsel %vm1026, %v1017, %v1033
    %v1035 = vsel %vm1025, %v1032, %v1034
    %v1036 = vsel %vm1024, %v1014, %v1017
    %v1037 = vsel %vm1027, %v1023, 1326507024
    %v1038 = vsel %vm1026, %v1020, %v1037
    %v1039 = vsel %vm1025, %v1036, %v1038
    %v1040 = vshll.u32 %v1000, 8
    %v1041 = vmul.u32.u64.compose %v1040, %v1039
    %v1042 = vextract.low.u32 %v1041
    %v1043 = vextract.high.u32 %v1041
    %v1044 = vmul.u32.u64.compose %v1040, %v1035
    %v1045 = vextract.low.u32 %v1044
    %v1046 = vextract.high.u32 %v1044
    %v1047 = vmul.u32 %v1040, %v1031
    %v1048 = vadd.s32 %v1043, %v1045
    %vm1049 = vc.u32 %v1043, %v1045
    %v1050 = vadd.s32 %v1046, 1
    %v1051 = vsel %vm1049, %v1050, %v1046
    %v1052 = vadd.s32 %v1047, %v1051
    %v1053 = vadd.s32 %v1052, 536870912
    %v1054 = vshrl.u32 %v1053, 30
    %v1055 = vshll.u32 %v1054, 30
    %v1056 = vsub.s32 %v1052, %v1055
    %vm1057 = vcmp.lt.s32.totalorder %v1056, 0
    %v1058 = vsub.s32 0, %v1056
    %v1059 = vsel %vm1057, %v1058, %v1056
    %v1060 = vclz %v1059
    %v1061 = vsub.s32 %v1060, 2
    %vm1062 = vcmp.gt.s32.totalorder 0, %v1061
    %v1063 = vsel %vm1062, 0, %v1061
    %v1064 = vsub.s32 32, %v1063
    %v1065 = vshll.u32 %v1056, %v1063
    %v1066 = vshrl.u32 %v1048, %v1064
    %v1067 = vor.u32 %v1065, %v1066
    %v1068 = vsub.s32 4294967266, %v1063
    %v1069 = vadd.s32 %v1068, 127
    %v1070 = vshll.u32 %v1069, 23
    %v1071 = vor.u32 4788187, %v1070
    %v1072 = vand.u32 2147483647, %v1071
    %v1074 = vcvt.s32.f32 %v1067
    %v1075 = vmul.f32 %v1074, %v1072
    %v1076 = vxor.u32 %v1075, 2147483648
    %v1077 = vsel %vm994, %v1076, %v1075
    %v1078 = vsub.s32 4, %v1054
    %v1079 = vsel %vm994, %v1078, %v1054
    %v1080 = vsel %vm993, %v888, %v1077
    %v1081 = vsel %vm993, 0, %v1079
    %v1082 = vcosq.f32.pop %v1080
    %v1083 = vsinq.f32.pop %v1080
    %vm1084 = vweird.f32 %v888
    %v1085 = vand.u32 %v1081, 3
    %vm1086 = vcmp.lt.s32.totalorder %v1085, 2
    %vm1087 = vcmp.eq.s32.totalorder %v1085, 0
    %v1088 = vxor.u32 %v1083, 2147483648
    %v1089 = vsel %vm1087, %v1082, %v1088
    %vm1090 = vcmp.eq.s32.totalorder %v1085, 2
    %v1091 = vxor.u32 %v1082, 2147483648
    %v1092 = vsel %vm1090, %v1091, %v1083
    %v1093 = vsel %vm1086, %v1089, %v1092
    %v1094 = vsel %vm1084, nan, %v1093
    %v1095 = vmul.f32 %v678, %v991
    %v1096 = vmul.f32 %v680, %v1094
    %v1097 = vand.u32 2147483647, %v784
    %vm1098 = vcmp.le.f32.partialorder %v1097, 0.7853982
    %vm1099 = vcmp.lt.s32.totalorder %v784, 0
    %v1100 = vand.u32 %v784, 2139095040
    %v1101 = vshrl.u32 %v1100, 23
    %v1102 = vsub.s32 %v1101, 127
    %v1103 = vand.u32 2147483647, %v784
    %v1104 = vand.u32 %v1103, 8388607
    %v1105 = vor.u32 %v1104, 8388608
    %v1106 = vsub.s32 0, %v1105
    %v1107 = vadd.s32 %v1102, 1
    %vm1108 = vcmp.gt.s32.totalorder %v1107, 0
    %v1109 = vsel %vm1108, %v1107, 0
    %v1110 = vshrl.u32 %v1109, 5
    %v1111 = vand.u32 %v1109, 31
    %v1112 = vsub.s32 32, %v1111
    %v1113 = vshrl.u32 683565275, %v1112
    %v1114 = vshll.u32 683565275, %v1111
    %v1115 = vshrl.u32 2475754826, %v1112
    %v1116 = vor.u32 %v1114, %v1115
    %v1117 = vshll.u32 2475754826, %v1111
    %v1118 = vshrl.u32 2131351028, %v1112
    %v1119 = vor.u32 %v1117, %v1118
    %v1120 = vshll.u32 2131351028, %v1111
    %v1121 = vshrl.u32 2102212464, %v1112
    %v1122 = vor.u32 %v1120, %v1121
    %v1123 = vshll.u32 2102212464, %v1111
    %v1124 = vshrl.u32 920167782, %v1112
    %v1125 = vor.u32 %v1123, %v1124
    %v1126 = vshll.u32 920167782, %v1111
    %v1127 = vshrl.u32 1326507024, %v1112
    %v1128 = vor.u32 %v1126, %v1127
    %vm1129 = vcmp.lt.s32.totalorder %v1110, 1
    %vm1130 = vcmp.lt.s32.totalorder %v1110, 2
    %vm1131 = vcmp.lt.s32.totalorder %v1110, 3
    %vm1132 = vcmp.lt.s32.totalorder %v1110, 4
    %v1133 = vsel %vm1129, %v1113, %v1116
    %v1134 = vsel %vm1132, %v1122, 2102212464
    %v1135 = vsel %vm1131, %v1119, %v1134
    %v1136 = vsel %vm1130, %v1133, %v1135
    %v1137 = vsel %vm1129, %v1116, %v1119
    %v1138 = vsel %vm1132, %v1125, 920167782
    %v1139 = vsel %vm1131, %v1122, %v1138
    %v1140 = vsel %vm1130, %v1137, %v1139
    %v1141 = vsel %vm1129, %v1119, %v1122
    %v1142 = vsel %vm1132, %v1128, 1326507024
    %v1143 = vsel %vm1131, %v1125, %v1142
    %v1144 = vsel %vm1130, %v1141, %v1143
    %v1145 = vshll.u32 %v1105, 8
    %v1146 = vmul.u32.u64.compose %v1145, %v1144
    %v1147 = vextract.low.u32 %v1146
    %v1148 = vextract.high.u32 %v1146
    %v1149 = vmul.u32.u64.compose %v1145, %v1140
    %v1150 = vextract.low.u32 %v1149
    %v1151 = vextract.high.u32 %v1149
    %v1152 = vmul.u32 %v1145, %v1136
    %v1153 = vadd.s32 %v1148, %v1150
    %vm1154 = vc.u32 %v1148, %v1150
    %v1155 = vadd.s32 %v1151, 1
    %v1156 = vsel %vm1154, %v1155, %v1151
    %v1157 = vadd.s32 %v1152, %v1156
    %v1158 = vadd.s32 %v1157, 536870912
    %v1159 = vshrl.u32 %v1158, 30
    %v1160 = vshll.u32 %v1159, 30
    %v1161 = vsub.s32 %v1157, %v1160
    %vm1162 = vcmp.lt.s32.totalorder %v1161, 0
    %v1163 = vsub.s32 0, %v1161
    %v1164 = vsel %vm1162, %v1163, %v1161
    %v1165 = vclz %v1164
    %v1166 = vsub.s32 %v1165, 2
    %vm1167 = vcmp.gt.s32.totalorder 0, %v1166
    %v1168 = vsel %vm1167, 0, %v1166
    %v1169 = vsub.s32 32, %v1168
    %v1170 = vshll.u32 %v1161, %v1168
    %v1171 = vshrl.u32 %v1153, %v1169
    %v1172 = vor.u32 %v1170, %v1171
    %v1173 = vsub.s32 4294967266, %v1168
    %v1174 = vadd.s32 %v1173, 127
    %v1175 = vshll.u32 %v1174, 23
    %v1176 = vor.u32 4788187, %v1175
    %v1177 = vand.u32 2147483647, %v1176
    %v1179 = vcvt.s32.f32 %v1172
    %v1180 = vmul.f32 %v1179, %v1177
    %v1181 = vxor.u32 %v1180, 2147483648
    %v1182 = vsel %vm1099, %v1181, %v1180
    %v1183 = vsub.s32 4, %v1159
    %v1184 = vsel %vm1099, %v1183, %v1159
    %v1185 = vsel %vm1098, %v784, %v1182
    %v1186 = vsel %vm1098, 0, %v1184
    %v1187 = vcosq.f32.pop %v1185
    %v1188 = vsinq.f32.pop %v1185
    %vm1189 = vweird.f32 %v784
    %v1190 = vadd.s32 %v1186, 3
    %v1191 = vand.u32 %v1190, 3
    %vm1192 = vcmp.lt.s32.totalorder %v1191, 2
    %vm1193 = vcmp.eq.s32.totalorder %v1191, 0
    %v1194 = vxor.u32 %v1188, 2147483648
    %v1195 = vsel %vm1193, %v1187, %v1194
    %vm1196 = vcmp.eq.s32.totalorder %v1191, 2
    %v1197 = vxor.u32 %v1187, 2147483648
    %v1198 = vsel %vm1196, %v1197, %v1188
    %v1199 = vsel %vm1192, %v1195, %v1198
    %v1200 = vsel %vm1189, nan, %v1199
    %v1201 = vand.u32 2147483647, %v888
    %vm1202 = vcmp.le.f32.partialorder %v1201, 0.7853982
    %vm1203 = vcmp.lt.s32.totalorder %v888, 0
    %v1204 = vand.u32 %v888, 2139095040
    %v1205 = vshrl.u32 %v1204, 23
    %v1206 = vsub.s32 %v1205, 127
    %v1207 = vand.u32 2147483647, %v888
    %v1208 = vand.u32 %v1207, 8388607
    %v1209 = vor.u32 %v1208, 8388608
    %v1210 = vsub.s32 0, %v1209
    %v1211 = vadd.s32 %v1206, 1
    %vm1212 = vcmp.gt.s32.totalorder %v1211, 0
    %v1213 = vsel %vm1212, %v1211, 0
    %v1214 = vshrl.u32 %v1213, 5
    %v1215 = vand.u32 %v1213, 31
    %v1216 = vsub.s32 32, %v1215
    %v1217 = vshrl.u32 683565275, %v1216
    %v1218 = vshll.u32 683565275, %v1215
    %v1219 = vshrl.u32 2475754826, %v1216
    %v1220 = vor.u32 %v1218, %v1219
    %v1221 = vshll.u32 2475754826, %v1215
    %v1222 = vshrl.u32 2131351028, %v1216
    %v1223 = vor.u32 %v1221, %v1222
    %v1224 = vshll.u32 2131351028, %v1215
    %v1225 = vshrl.u32 2102212464, %v1216
    %v1226 = vor.u32 %v1224, %v1225
    %v1227 = vshll.u32 2102212464, %v1215
    %v1228 = vshrl.u32 920167782, %v1216
    %v1229 = vor.u32 %v1227, %v1228
    %v1230 = vshll.u32 920167782, %v1215
    %v1231 = vshrl.u32 1326507024, %v1216
    %v1232 = vor.u32 %v1230, %v1231
    %vm1233 = vcmp.lt.s32.totalorder %v1214, 1
    %vm1234 = vcmp.lt.s32.totalorder %v1214, 2
    %vm1235 = vcmp.lt.s32.totalorder %v1214, 3
    %vm1236 = vcmp.lt.s32.totalorder %v1214, 4
    %v1237 = vsel %vm1233, %v1217, %v1220
    %v1238 = vsel %vm1236, %v1226, 2102212464
    %v1239 = vsel %vm1235, %v1223, %v1238
    %v1240 = vsel %vm1234, %v1237, %v1239
    %v1241 = vsel %vm1233, %v1220, %v1223
    %v1242 = vsel %vm1236, %v1229, 920167782
    %v1243 = vsel %vm1235, %v1226, %v1242
    %v1244 = vsel %vm1234, %v1241, %v1243
    %v1245 = vsel %vm1233, %v1223, %v1226
    %v1246 = vsel %vm1236, %v1232, 1326507024
    %v1247 = vsel %vm1235, %v1229, %v1246
    %v1248 = vsel %vm1234, %v1245, %v1247
    %v1249 = vshll.u32 %v1209, 8
    %v1250 = vmul.u32.u64.compose %v1249, %v1248
    %v1251 = vextract.low.u32 %v1250
    %v1252 = vextract.high.u32 %v1250
    %v1253 = vmul.u32.u64.compose %v1249, %v1244
    %v1254 = vextract.low.u32 %v1253
    %v1255 = vextract.high.u32 %v1253
    %v1256 = vmul.u32 %v1249, %v1240
    %v1257 = vadd.s32 %v1252, %v1254
    %vm1258 = vc.u32 %v1252, %v1254
    %v1259 = vadd.s32 %v1255, 1
    %v1260 = vsel %vm1258, %v1259, %v1255
    %v1261 = vadd.s32 %v1256, %v1260
    %v1262 = vadd.s32 %v1261, 536870912
    %v1263 = vshrl.u32 %v1262, 30
    %v1264 = vshll.u32 %v1263, 30
    %v1265 = vsub.s32 %v1261, %v1264
    %vm1266 = vcmp.lt.s32.totalorder %v1265, 0
    %v1267 = vsub.s32 0, %v1265
    %v1268 = vsel %vm1266, %v1267, %v1265
    %v1269 = vclz %v1268
    %v1270 = vsub.s32 %v1269, 2
    %vm1271 = vcmp.gt.s32.totalorder 0, %v1270
    %v1272 = vsel %vm1271, 0, %v1270
    %v1273 = vsub.s32 32, %v1272
    %v1274 = vshll.u32 %v1265, %v1272
    %v1275 = vshrl.u32 %v1257, %v1273
    %v1276 = vor.u32 %v1274, %v1275
    %v1277 = vsub.s32 4294967266, %v1272
    %v1278 = vadd.s32 %v1277, 127
    %v1279 = vshll.u32 %v1278, 23
    %v1280 = vor.u32 4788187, %v1279
    %v1281 = vand.u32 2147483647, %v1280
    %v1283 = vcvt.s32.f32 %v1276
    %v1284 = vmul.f32 %v1283, %v1281
    %v1285 = vxor.u32 %v1284, 2147483648
    %v1286 = vsel %vm1203, %v1285, %v1284
    %v1287 = vsub.s32 4, %v1263
    %v1288 = vsel %vm1203, %v1287, %v1263
    %v1289 = vsel %vm1202, %v888, %v1286
    %v1290 = vsel %vm1202, 0, %v1288
    %v1291 = vcosq.f32.pop %v1289
    %v1292 = vsinq.f32.pop %v1289
    %vm1293 = vweird.f32 %v888
    %v1294 = vadd.s32 %v1290, 3
    %v1295 = vand.u32 %v1294, 3
    %vm1296 = vcmp.lt.s32.totalorder %v1295, 2
    %vm1297 = vcmp.eq.s32.totalorder %v1295, 0
    %v1298 = vxor.u32 %v1292, 2147483648
    %v1299 = vsel %vm1297, %v1291, %v1298
    %vm1300 = vcmp.eq.s32.totalorder %v1295, 2
    %v1301 = vxor.u32 %v1291, 2147483648
    %v1302 = vsel %vm1300, %v1301, %v1292
    %v1303 = vsel %vm1296, %v1299, %v1302
    %v1304 = vsel %vm1293, nan, %v1303
    %v1305 = vmul.f32 %v678, %v1200
    %v1306 = vmul.f32 %v680, %v1304
    %v1307 = vld [vmem:[#allocation5 + $0x120] sm:$0xf]
    %v1308 = vld [vmem:[#allocation5 + $0x140] sm:$0xff]
    %v1309 = vld [vmem:[#allocation5 + $0x148] sm:$0xff]
    %v1310 = vld [vmem:[#allocation5 + $0x150] sm:$0xff]
    %v1311 = vld [vmem:[#allocation5 + $0x158] sm:$0xff]
    %v1313 = vsel %vm53, %v1307, 0
    %1315 = vmatprep.subr.mxu0 0.0
    %1316 = vmatpush1.msra.mxu0 %v1095
    %1317 = vmatprep.subr.mxu0 0.0
    %1318 = vmatpush1.msra.mxu0 %v1096
    %1319 = vmatprep.subr.mxu0 0.0
    %1320 = vmatpush1.msra.mxu0 %v1305
    %1321 = vmatprep.subr.mxu0 0.0
    %1322 = vmatpush1.msra.mxu0 %v1306
    %1323 = vmatprep.subr.mxu0 0.0
    %1324 = vmatpush1.msra.mxu0 0.0
    %1325 = vmatprep.subr.mxu0 0.0
    %1326 = vmatpush1.msra.mxu0 0.0
    %1327 = vmatprep.subr.mxu0 0.0
    %1328 = vmatpush1.msra.mxu0 0.0
    %1329 = vmatprep.subr.mxu0 0.0
    %1330 = vmatpush1.msra.mxu0 0.0
    %1331 = vmatprep.subr.mxu0 0.0
    %1332 = vmatpush1.msra.mxu0 0.0
    %1333 = vmatprep.subr.mxu0 0.0
    %1334 = vmatpush1.msra.mxu0 0.0
    %1335 = vmatprep.subr.mxu0 0.0
    %1336 = vmatpush1.msra.mxu0 0.0
    %1337 = vmatprep.subr.mxu0 0.0
    %1338 = vmatpush1.msra.mxu0 0.0
    %1339 = vmatprep.subr.mxu0 0.0
    %1340 = vmatpush1.msra.mxu0 0.0
    %1341 = vmatprep.subr.mxu0 0.0
    %1342 = vmatpush1.msra.mxu0 0.0
    %1343 = vmatprep.subr.mxu0 0.0
    %1344 = vmatpush1.msra.mxu0 0.0
    %1345 = vmatprep.subr.mxu0 0.0
    %1346 = vmatpush1.msra.mxu0 0.0
    %1347 = vmatprep.subr.mxu0 0.0
    %1348 = vmatpush1.msra.mxu0 0.0
    %1349 = vmatprep.subr.mxu0 0.0
    %1350 = vmatpush1.msra.mxu0 0.0
    %1351 = vmatprep.subr.mxu0 0.0
    %1352 = vmatpush1.msra.mxu0 0.0
    %1353 = vmatprep.subr.mxu0 0.0
    %1354 = vmatpush1.msra.mxu0 0.0
    %1355 = vmatprep.subr.mxu0 0.0
    %1356 = vmatpush1.msra.mxu0 0.0
    %1357 = vmatprep.subr.mxu0 0.0
    %1358 = vmatpush1.msra.mxu0 0.0
    %1359 = vmatprep.subr.mxu0 0.0
    %1360 = vmatpush1.msra.mxu0 0.0
    %1361 = vmatprep.subr.mxu0 0.0
    %1362 = vmatpush1.msra.mxu0 0.0
    %1363 = vmatprep.subr.mxu0 0.0
    %1364 = vmatpush1.msra.mxu0 0.0
    %1365 = vmatprep.subr.mxu0 0.0
    %1366 = vmatpush1.msra.mxu0 0.0
    %1367 = vmatprep.subr.mxu0 0.0
    %1368 = vmatpush1.msra.mxu0 0.0
    %1369 = vmatprep.subr.mxu0 0.0
    %1370 = vmatpush1.msra.mxu0 0.0
    %1371 = vmatprep.subr.mxu0 0.0
    %1372 = vmatpush1.msra.mxu0 0.0
    %1373 = vmatprep.subr.mxu0 0.0
    %1374 = vmatpush1.msra.mxu0 0.0
    %1375 = vmatprep.subr.mxu0 0.0
    %1376 = vmatpush1.msra.mxu0 0.0
    %1377 = vmatprep.subr.mxu0 0.0
    %1378 = vmatpush1.msra.mxu0 0.0
    %1379 = vmatprep.mubr.f32.mxu0 0.0
    %1380 = vmatmul.mubr.f32.gmra.mrb[0].mxu0 %v1313
    %v1381 = vpop.f32.mrb[0].mxu0
    %v1382 = vadd.f32 0.0, %v1381
    %v1383 = vpop.f32.mrb[0].mxu0
    %1384 = vdwg.mxu0
    %v1385 = vld [vmem:[#allocation5 + $0x128] sm:$0xf]
    %v1386 = vld [vmem:[#allocation5 + $0x160] sm:$0xff]
    %v1387 = vld [vmem:[#allocation5 + $0x168] sm:$0xff]
    %v1388 = vld [vmem:[#allocation5 + $0x170] sm:$0xff]
    %v1389 = vld [vmem:[#allocation5 + $0x178] sm:$0xff]
    %v1391 = vsel %vm53, %v1385, 0
    %1393 = vmatprep.subr.mxu0 0.0
    %1394 = vmatpush1.msra.mxu0 %v1095
    %1395 = vmatprep.subr.mxu0 0.0
    %1396 = vmatpush1.msra.mxu0 %v1096
    %1397 = vmatprep.subr.mxu0 0.0
    %1398 = vmatpush1.msra.mxu0 %v1305
    %1399 = vmatprep.subr.mxu0 0.0
    %1400 = vmatpush1.msra.mxu0 %v1306
    %1401 = vmatprep.subr.mxu0 0.0
    %1402 = vmatpush1.msra.mxu0 0.0
    %1403 = vmatprep.subr.mxu0 0.0
    %1404 = vmatpush1.msra.mxu0 0.0
    %1405 = vmatprep.subr.mxu0 0.0
    %1406 = vmatpush1.msra.mxu0 0.0
    %1407 = vmatprep.subr.mxu0 0.0
    %1408 = vmatpush1.msra.mxu0 0.0
    %1409 = vmatprep.subr.mxu0 0.0
    %1410 = vmatpush1.msra.mxu0 0.0
    %1411 = vmatprep.subr.mxu0 0.0
    %1412 = vmatpush1.msra.mxu0 0.0
    %1413 = vmatprep.subr.mxu0 0.0
    %1414 = vmatpush1.msra.mxu0 0.0
    %1415 = vmatprep.subr.mxu0 0.0
    %1416 = vmatpush1.msra.mxu0 0.0
    %1417 = vmatprep.subr.mxu0 0.0
    %1418 = vmatpush1.msra.mxu0 0.0
    %1419 = vmatprep.subr.mxu0 0.0
    %1420 = vmatpush1.msra.mxu0 0.0
    %1421 = vmatprep.subr.mxu0 0.0
    %1422 = vmatpush1.msra.mxu0 0.0
    %1423 = vmatprep.subr.mxu0 0.0
    %1424 = vmatpush1.msra.mxu0 0.0
    %1425 = vmatprep.subr.mxu0 0.0
    %1426 = vmatpush1.msra.mxu0 0.0
    %1427 = vmatprep.subr.mxu0 0.0
    %1428 = vmatpush1.msra.mxu0 0.0
    %1429 = vmatprep.subr.mxu0 0.0
    %1430 = vmatpush1.msra.mxu0 0.0
    %1431 = vmatprep.subr.mxu0 0.0
    %1432 = vmatpush1.msra.mxu0 0.0
    %1433 = vmatprep.subr.mxu0 0.0
    %1434 = vmatpush1.msra.mxu0 0.0
    %1435 = vmatprep.subr.mxu0 0.0
    %1436 = vmatpush1.msra.mxu0 0.0
    %1437 = vmatprep.subr.mxu0 0.0
    %1438 = vmatpush1.msra.mxu0 0.0
    %1439 = vmatprep.subr.mxu0 0.0
    %1440 = vmatpush1.msra.mxu0 0.0
    %1441 = vmatprep.subr.mxu0 0.0
    %1442 = vmatpush1.msra.mxu0 0.0
    %1443 = vmatprep.subr.mxu0 0.0
    %1444 = vmatpush1.msra.mxu0 0.0
    %1445 = vmatprep.subr.mxu0 0.0
    %1446 = vmatpush1.msra.mxu0 0.0
    %1447 = vmatprep.subr.mxu0 0.0
    %1448 = vmatpush1.msra.mxu0 0.0
    %1449 = vmatprep.subr.mxu0 0.0
    %1450 = vmatpush1.msra.mxu0 0.0
    %1451 = vmatprep.subr.mxu0 0.0
    %1452 = vmatpush1.msra.mxu0 0.0
    %1453 = vmatprep.subr.mxu0 0.0
    %1454 = vmatpush1.msra.mxu0 0.0
    %1455 = vmatprep.subr.mxu0 0.0
    %1456 = vmatpush1.msra.mxu0 0.0
    %1457 = vmatprep.mubr.f32.mxu0 0.0
    %1458 = vmatmul.mubr.f32.gmra.mrb[0].mxu0 %v1391
    %v1459 = vpop.f32.mrb[0].mxu0
    %v1460 = vadd.f32 0.0, %v1459
    %v1461 = vpop.f32.mrb[0].mxu0
    %1462 = vdwg.mxu0
    %v1464 = vsel %vm53, %v1460, 0
    %1466 = vmatprep.subr.mxu0 0.0
    %1467 = vmatpush1.msra.mxu0 %v1386
    %1468 = vmatprep.subr.mxu0 0.0
    %1469 = vmatpush1.msra.mxu0 %v1387
    %1470 = vmatprep.subr.mxu0 0.0
    %1471 = vmatpush1.msra.mxu0 %v1388
    %1472 = vmatprep.subr.mxu0 0.0
    %1473 = vmatpush1.msra.mxu0 %v1389
    %1474 = vmatprep.subr.mxu0 0.0
    %1475 = vmatpush1.msra.mxu0 0.0
    %1476 = vmatprep.subr.mxu0 0.0
    %1477 = vmatpush1.msra.mxu0 0.0
    %1478 = vmatprep.subr.mxu0 0.0
    %1479 = vmatpush1.msra.mxu0 0.0
    %1480 = vmatprep.subr.mxu0 0.0
    %1481 = vmatpush1.msra.mxu0 0.0
    %1482 = vmatprep.subr.mxu0 0.0
    %1483 = vmatpush1.msra.mxu0 0.0
    %1484 = vmatprep.subr.mxu0 0.0
    %1485 = vmatpush1.msra.mxu0 0.0
    %1486 = vmatprep.subr.mxu0 0.0
    %1487 = vmatpush1.msra.mxu0 0.0
    %1488 = vmatprep.subr.mxu0 0.0
    %1489 = vmatpush1.msra.mxu0 0.0
    %1490 = vmatprep.subr.mxu0 0.0
    %1491 = vmatpush1.msra.mxu0 0.0
    %1492 = vmatprep.subr.mxu0 0.0
    %1493 = vmatpush1.msra.mxu0 0.0
    %1494 = vmatprep.subr.mxu0 0.0
    %1495 = vmatpush1.msra.mxu0 0.0
    %1496 = vmatprep.subr.mxu0 0.0
    %1497 = vmatpush1.msra.mxu0 0.0
    %1498 = vmatprep.subr.mxu0 0.0
    %1499 = vmatpush1.msra.mxu0 0.0
    %1500 = vmatprep.subr.mxu0 0.0
    %1501 = vmatpush1.msra.mxu0 0.0
    %1502 = vmatprep.subr.mxu0 0.0
    %1503 = vmatpush1.msra.mxu0 0.0
    %1504 = vmatprep.subr.mxu0 0.0
    %1505 = vmatpush1.msra.mxu0 0.0
    %1506 = vmatprep.subr.mxu0 0.0
    %1507 = vmatpush1.msra.mxu0 0.0
    %1508 = vmatprep.subr.mxu0 0.0
    %1509 = vmatpush1.msra.mxu0 0.0
    %1510 = vmatprep.subr.mxu0 0.0
    %1511 = vmatpush1.msra.mxu0 0.0
    %1512 = vmatprep.subr.mxu0 0.0
    %1513 = vmatpush1.msra.mxu0 0.0
    %1514 = vmatprep.subr.mxu0 0.0
    %1515 = vmatpush1.msra.mxu0 0.0
    %1516 = vmatprep.subr.mxu0 0.0
    %1517 = vmatpush1.msra.mxu0 0.0
    %1518 = vmatprep.subr.mxu0 0.0
    %1519 = vmatpush1.msra.mxu0 0.0
    %1520 = vmatprep.subr.mxu0 0.0
    %1521 = vmatpush1.msra.mxu0 0.0
    %1522 = vmatprep.subr.mxu0 0.0
    %1523 = vmatpush1.msra.mxu0 0.0
    %1524 = vmatprep.subr.mxu0 0.0
    %1525 = vmatpush1.msra.mxu0 0.0
    %1526 = vmatprep.subr.mxu0 0.0
    %1527 = vmatpush1.msra.mxu0 0.0
    %1528 = vmatprep.subr.mxu0 0.0
    %1529 = vmatpush1.msra.mxu0 0.0
    %1530 = vmatprep.mubr.f32.mxu0 0.0
    %1531 = vmatmul.mubr.f32.gmra.mrb[0].mxu0 %v1464
    %v1532 = vpop.f32.mrb[0].mxu0
    %v1533 = vadd.f32 0.0, %v1532
    %v1534 = vpop.f32.mrb[0].mxu0
    %1535 = vdwg.mxu0
    %v1537 = vsel %vm53, %v1382, 0
    %1539 = vmatprep.subr.mxu0 0.0
    %1540 = vmatpush1.msra.mxu0 %v1308
    %1541 = vmatprep.subr.mxu0 0.0
    %1542 = vmatpush1.msra.mxu0 %v1309
    %1543 = vmatprep.subr.mxu0 0.0
    %1544 = vmatpush1.msra.mxu0 %v1310
    %1545 = vmatprep.subr.mxu0 0.0
    %1546 = vmatpush1.msra.mxu0 %v1311
    %1547 = vmatprep.subr.mxu0 0.0
    %1548 = vmatpush1.msra.mxu0 0.0
    %1549 = vmatprep.subr.mxu0 0.0
    %1550 = vmatpush1.msra.mxu0 0.0
    %1551 = vmatprep.subr.mxu0 0.0
    %1552 = vmatpush1.msra.mxu0 0.0
    %1553 = vmatprep.subr.mxu0 0.0
    %1554 = vmatpush1.msra.mxu0 0.0
    %1555 = vmatprep.subr.mxu0 0.0
    %1556 = vmatpush1.msra.mxu0 0.0
    %1557 = vmatprep.subr.mxu0 0.0
    %1558 = vmatpush1.msra.mxu0 0.0
    %1559 = vmatprep.subr.mxu0 0.0
    %1560 = vmatpush1.msra.mxu0 0.0
    %1561 = vmatprep.subr.mxu0 0.0
    %1562 = vmatpush1.msra.mxu0 0.0
    %1563 = vmatprep.subr.mxu0 0.0
    %1564 = vmatpush1.msra.mxu0 0.0
    %1565 = vmatprep.subr.mxu0 0.0
    %1566 = vmatpush1.msra.mxu0 0.0
    %1567 = vmatprep.subr.mxu0 0.0
    %1568 = vmatpush1.msra.mxu0 0.0
    %1569 = vmatprep.subr.mxu0 0.0
    %1570 = vmatpush1.msra.mxu0 0.0
    %1571 = vmatprep.subr.mxu0 0.0
    %1572 = vmatpush1.msra.mxu0 0.0
    %1573 = vmatprep.subr.mxu0 0.0
    %1574 = vmatpush1.msra.mxu0 0.0
    %1575 = vmatprep.subr.mxu0 0.0
    %1576 = vmatpush1.msra.mxu0 0.0
    %1577 = vmatprep.subr.mxu0 0.0
    %1578 = vmatpush1.msra.mxu0 0.0
    %1579 = vmatprep.subr.mxu0 0.0
    %1580 = vmatpush1.msra.mxu0 0.0
    %1581 = vmatprep.subr.mxu0 0.0
    %1582 = vmatpush1.msra.mxu0 0.0
    %1583 = vmatprep.subr.mxu0 0.0
    %1584 = vmatpush1.msra.mxu0 0.0
    %1585 = vmatprep.subr.mxu0 0.0
    %1586 = vmatpush1.msra.mxu0 0.0
    %1587 = vmatprep.subr.mxu0 0.0
    %1588 = vmatpush1.msra.mxu0 0.0
    %1589 = vmatprep.subr.mxu0 0.0
    %1590 = vmatpush1.msra.mxu0 0.0
    %1591 = vmatprep.subr.mxu0 0.0
    %1592 = vmatpush1.msra.mxu0 0.0
    %1593 = vmatprep.subr.mxu0 0.0
    %1594 = vmatpush1.msra.mxu0 0.0
    %1595 = vmatprep.subr.mxu0 0.0
    %1596 = vmatpush1.msra.mxu0 0.0
    %1597 = vmatprep.subr.mxu0 0.0
    %1598 = vmatpush1.msra.mxu0 0.0
    %1599 = vmatprep.subr.mxu0 0.0
    %1600 = vmatpush1.msra.mxu0 0.0
    %1601 = vmatprep.subr.mxu0 0.0
    %1602 = vmatpush1.msra.mxu0 0.0
    %1603 = vmatprep.mubr.f32.mxu0 0.0
    %1604 = vmatmul.mubr.f32.gmra.mrb[0].mxu0 %v1537
    %v1605 = vpop.f32.mrb[0].mxu0
    %v1606 = vadd.f32 %v1533, %v1605
    %v1607 = vpop.f32.mrb[0].mxu0
    %1608 = vdwg.mxu0
    %v1609 = vld [vmem:[#allocation5 + $0x130] sm:$0xf]
    %v1610 = vld [vmem:[#allocation5 + $0x180] sm:$0xff]
    %v1611 = vld [vmem:[#allocation5 + $0x188] sm:$0xff]
    %v1612 = vld [vmem:[#allocation5 + $0x190] sm:$0xff]
    %v1613 = vld [vmem:[#allocation5 + $0x198] sm:$0xff]
    %v1615 = vsel %vm53, %v1609, 0
    %1617 = vmatprep.subr.mxu0 0.0
    %1618 = vmatpush1.msra.mxu0 %v1095
    %1619 = vmatprep.subr.mxu0 0.0
    %1620 = vmatpush1.msra.mxu0 %v1096
    %1621 = vmatprep.subr.mxu0 0.0
    %1622 = vmatpush1.msra.mxu0 %v1305
    %1623 = vmatprep.subr.mxu0 0.0
    %1624 = vmatpush1.msra.mxu0 %v1306
    %1625 = vmatprep.subr.mxu0 0.0
    %1626 = vmatpush1.msra.mxu0 0.0
    %1627 = vmatprep.subr.mxu0 0.0
    %1628 = vmatpush1.msra.mxu0 0.0
    %1629 = vmatprep.subr.mxu0 0.0
    %1630 = vmatpush1.msra.mxu0 0.0
    %1631 = vmatprep.subr.mxu0 0.0
    %1632 = vmatpush1.msra.mxu0 0.0
    %1633 = vmatprep.subr.mxu0 0.0
    %1634 = vmatpush1.msra.mxu0 0.0
    %1635 = vmatprep.subr.mxu0 0.0
    %1636 = vmatpush1.msra.mxu0 0.0
    %1637 = vmatprep.subr.mxu0 0.0
    %1638 = vmatpush1.msra.mxu0 0.0
    %1639 = vmatprep.subr.mxu0 0.0
    %1640 = vmatpush1.msra.mxu0 0.0
    %1641 = vmatprep.subr.mxu0 0.0
    %1642 = vmatpush1.msra.mxu0 0.0
    %1643 = vmatprep.subr.mxu0 0.0
    %1644 = vmatpush1.msra.mxu0 0.0
    %1645 = vmatprep.subr.mxu0 0.0
    %1646 = vmatpush1.msra.mxu0 0.0
    %1647 = vmatprep.subr.mxu0 0.0
    %1648 = vmatpush1.msra.mxu0 0.0
    %1649 = vmatprep.subr.mxu0 0.0
    %1650 = vmatpush1.msra.mxu0 0.0
    %1651 = vmatprep.subr.mxu0 0.0
    %1652 = vmatpush1.msra.mxu0 0.0
    %1653 = vmatprep.subr.mxu0 0.0
    %1654 = vmatpush1.msra.mxu0 0.0
    %1655 = vmatprep.subr.mxu0 0.0
    %1656 = vmatpush1.msra.mxu0 0.0
    %1657 = vmatprep.subr.mxu0 0.0
    %1658 = vmatpush1.msra.mxu0 0.0
    %1659 = vmatprep.subr.mxu0 0.0
    %1660 = vmatpush1.msra.mxu0 0.0
    %1661 = vmatprep.subr.mxu0 0.0
    %1662 = vmatpush1.msra.mxu0 0.0
    %1663 = vmatprep.subr.mxu0 0.0
    %1664 = vmatpush1.msra.mxu0 0.0
    %1665 = vmatprep.subr.mxu0 0.0
    %1666 = vmatpush1.msra.mxu0 0.0
    %1667 = vmatprep.subr.mxu0 0.0
    %1668 = vmatpush1.msra.mxu0 0.0
    %1669 = vmatprep.subr.mxu0 0.0
    %1670 = vmatpush1.msra.mxu0 0.0
    %1671 = vmatprep.subr.mxu0 0.0
    %1672 = vmatpush1.msra.mxu0 0.0
    %1673 = vmatprep.subr.mxu0 0.0
    %1674 = vmatpush1.msra.mxu0 0.0
    %1675 = vmatprep.subr.mxu0 0.0
    %1676 = vmatpush1.msra.mxu0 0.0
    %1677 = vmatprep.subr.mxu0 0.0
    %1678 = vmatpush1.msra.mxu0 0.0
    %1679 = vmatprep.subr.mxu0 0.0
    %1680 = vmatpush1.msra.mxu0 0.0
    %1681 = vmatprep.mubr.f32.mxu0 0.0
    %1682 = vmatmul.mubr.f32.gmra.mrb[0].mxu0 %v1615
    %v1683 = vpop.f32.mrb[0].mxu0
    %v1684 = vadd.f32 0.0, %v1683
    %v1685 = vpop.f32.mrb[0].mxu0
    %1686 = vdwg.mxu0
    %v1688 = vsel %vm53, %v1684, 0
    %1690 = vmatprep.subr.mxu0 0.0
    %1691 = vmatpush1.msra.mxu0 %v1610
    %1692 = vmatprep.subr.mxu0 0.0
    %1693 = vmatpush1.msra.mxu0 %v1611
    %1694 = vmatprep.subr.mxu0 0.0
    %1695 = vmatpush1.msra.mxu0 %v1612
    %1696 = vmatprep.subr.mxu0 0.0
    %1697 = vmatpush1.msra.mxu0 %v1613
    %1698 = vmatprep.subr.mxu0 0.0
    %1699 = vmatpush1.msra.mxu0 0.0
    %1700 = vmatprep.subr.mxu0 0.0
    %1701 = vmatpush1.msra.mxu0 0.0
    %1702 = vmatprep.subr.mxu0 0.0
    %1703 = vmatpush1.msra.mxu0 0.0
    %1704 = vmatprep.subr.mxu0 0.0
    %1705 = vmatpush1.msra.mxu0 0.0
    %1706 = vmatprep.subr.mxu0 0.0
    %1707 = vmatpush1.msra.mxu0 0.0
    %1708 = vmatprep.subr.mxu0 0.0
    %1709 = vmatpush1.msra.mxu0 0.0
    %1710 = vmatprep.subr.mxu0 0.0
    %1711 = vmatpush1.msra.mxu0 0.0
    %1712 = vmatprep.subr.mxu0 0.0
    %1713 = vmatpush1.msra.mxu0 0.0
    %1714 = vmatprep.subr.mxu0 0.0
    %1715 = vmatpush1.msra.mxu0 0.0
    %1716 = vmatprep.subr.mxu0 0.0
    %1717 = vmatpush1.msra.mxu0 0.0
    %1718 = vmatprep.subr.mxu0 0.0
    %1719 = vmatpush1.msra.mxu0 0.0
    %1720 = vmatprep.subr.mxu0 0.0
    %1721 = vmatpush1.msra.mxu0 0.0
    %1722 = vmatprep.subr.mxu0 0.0
    %1723 = vmatpush1.msra.mxu0 0.0
    %1724 = vmatprep.subr.mxu0 0.0
    %1725 = vmatpush1.msra.mxu0 0.0
    %1726 = vmatprep.subr.mxu0 0.0
    %1727 = vmatpush1.msra.mxu0 0.0
    %1728 = vmatprep.subr.mxu0 0.0
    %1729 = vmatpush1.msra.mxu0 0.0
    %1730 = vmatprep.subr.mxu0 0.0
    %1731 = vmatpush1.msra.mxu0 0.0
    %1732 = vmatprep.subr.mxu0 0.0
    %1733 = vmatpush1.msra.mxu0 0.0
    %1734 = vmatprep.subr.mxu0 0.0
    %1735 = vmatpush1.msra.mxu0 0.0
    %1736 = vmatprep.subr.mxu0 0.0
    %1737 = vmatpush1.msra.mxu0 0.0
    %1738 = vmatprep.subr.mxu0 0.0
    %1739 = vmatpush1.msra.mxu0 0.0
    %1740 = vmatprep.subr.mxu0 0.0
    %1741 = vmatpush1.msra.mxu0 0.0
    %1742 = vmatprep.subr.mxu0 0.0
    %1743 = vmatpush1.msra.mxu0 0.0
    %1744 = vmatprep.subr.mxu0 0.0
    %1745 = vmatpush1.msra.mxu0 0.0
    %1746 = vmatprep.subr.mxu0 0.0
    %1747 = vmatpush1.msra.mxu0 0.0
    %1748 = vmatprep.subr.mxu0 0.0
    %1749 = vmatpush1.msra.mxu0 0.0
    %1750 = vmatprep.subr.mxu0 0.0
    %1751 = vmatpush1.msra.mxu0 0.0
    %1752 = vmatprep.subr.mxu0 0.0
    %1753 = vmatpush1.msra.mxu0 0.0
    %1754 = vmatprep.mubr.f32.mxu0 0.0
    %1755 = vmatmul.mubr.f32.gmra.mrb[0].mxu0 %v1688
    %v1756 = vpop.f32.mrb[0].mxu0
    %v1757 = vadd.f32 0.0, %v1756
    %v1758 = vpop.f32.mrb[0].mxu0
    %1759 = vdwg.mxu0
    %v1760 = vadd.f32 %v1606, %v1757
    %v1761 = vld [vmem:[#allocation5 + $0x138] sm:$0xf]
    %v1762 = vld [vmem:[#allocation5 + $0x1a0] sm:$0xff]
    %v1763 = vld [vmem:[#allocation5 + $0x1a8] sm:$0xff]
    %v1764 = vld [vmem:[#allocation5 + $0x1b0] sm:$0xff]
    %v1765 = vld [vmem:[#allocation5 + $0x1b8] sm:$0xff]
    %v1767 = vsel %vm53, %v1761, 0
    %1769 = vmatprep.subr.mxu0 0.0
    %1770 = vmatpush1.msra.mxu0 %v1095
    %1771 = vmatprep.subr.mxu0 0.0
    %1772 = vmatpush1.msra.mxu0 %v1096
    %1773 = vmatprep.subr.mxu0 0.0
    %1774 = vmatpush1.msra.mxu0 %v1305
    %1775 = vmatprep.subr.mxu0 0.0
    %1776 = vmatpush1.msra.mxu0 %v1306
    %1777 = vmatprep.subr.mxu0 0.0
    %1778 = vmatpush1.msra.mxu0 0.0
    %1779 = vmatprep.subr.mxu0 0.0
    %1780 = vmatpush1.msra.mxu0 0.0
    %1781 = vmatprep.subr.mxu0 0.0
    %1782 = vmatpush1.msra.mxu0 0.0
    %1783 = vmatprep.subr.mxu0 0.0
    %1784 = vmatpush1.msra.mxu0 0.0
    %1785 = vmatprep.subr.mxu0 0.0
    %1786 = vmatpush1.msra.mxu0 0.0
    %1787 = vmatprep.subr.mxu0 0.0
    %1788 = vmatpush1.msra.mxu0 0.0
    %1789 = vmatprep.subr.mxu0 0.0
    %1790 = vmatpush1.msra.mxu0 0.0
    %1791 = vmatprep.subr.mxu0 0.0
    %1792 = vmatpush1.msra.mxu0 0.0
    %1793 = vmatprep.subr.mxu0 0.0
    %1794 = vmatpush1.msra.mxu0 0.0
    %1795 = vmatprep.subr.mxu0 0.0
    %1796 = vmatpush1.msra.mxu0 0.0
    %1797 = vmatprep.subr.mxu0 0.0
    %1798 = vmatpush1.msra.mxu0 0.0
    %1799 = vmatprep.subr.mxu0 0.0
    %1800 = vmatpush1.msra.mxu0 0.0
    %1801 = vmatprep.subr.mxu0 0.0
    %1802 = vmatpush1.msra.mxu0 0.0
    %1803 = vmatprep.subr.mxu0 0.0
    %1804 = vmatpush1.msra.mxu0 0.0
    %1805 = vmatprep.subr.mxu0 0.0
    %1806 = vmatpush1.msra.mxu0 0.0
    %1807 = vmatprep.subr.mxu0 0.0
    %1808 = vmatpush1.msra.mxu0 0.0
    %1809 = vmatprep.subr.mxu0 0.0
    %1810 = vmatpush1.msra.mxu0 0.0
    %1811 = vmatprep.subr.mxu0 0.0
    %1812 = vmatpush1.msra.mxu0 0.0
    %1813 = vmatprep.subr.mxu0 0.0
    %1814 = vmatpush1.msra.mxu0 0.0
    %1815 = vmatprep.subr.mxu0 0.0
    %1816 = vmatpush1.msra.mxu0 0.0
    %1817 = vmatprep.subr.mxu0 0.0
    %1818 = vmatpush1.msra.mxu0 0.0
    %1819 = vmatprep.subr.mxu0 0.0
    %1820 = vmatpush1.msra.mxu0 0.0
    %1821 = vmatprep.subr.mxu0 0.0
    %1822 = vmatpush1.msra.mxu0 0.0
    %1823 = vmatprep.subr.mxu0 0.0
    %1824 = vmatpush1.msra.mxu0 0.0
    %1825 = vmatprep.subr.mxu0 0.0
    %1826 = vmatpush1.msra.mxu0 0.0
    %1827 = vmatprep.subr.mxu0 0.0
    %1828 = vmatpush1.msra.mxu0 0.0
    %1829 = vmatprep.subr.mxu0 0.0
    %1830 = vmatpush1.msra.mxu0 0.0
    %1831 = vmatprep.subr.mxu0 0.0
    %1832 = vmatpush1.msra.mxu0 0.0
    %1833 = vmatprep.mubr.f32.mxu0 0.0
    %1834 = vmatmul.mubr.f32.gmra.mrb[0].mxu0 %v1767
    %v1835 = vpop.f32.mrb[0].mxu0
    %v1836 = vadd.f32 0.0, %v1835
    %v1837 = vpop.f32.mrb[0].mxu0
    %1838 = vdwg.mxu0
    %v1840 = vsel %vm53, %v1836, 0
    %1842 = vmatprep.subr.mxu0 0.0
    %1843 = vmatpush1.msra.mxu0 %v1762
    %1844 = vmatprep.subr.mxu0 0.0
    %1845 = vmatpush1.msra.mxu0 %v1763
    %1846 = vmatprep.subr.mxu0 0.0
    %1847 = vmatpush1.msra.mxu0 %v1764
    %1848 = vmatprep.subr.mxu0 0.0
    %1849 = vmatpush1.msra.mxu0 %v1765
    %1850 = vmatprep.subr.mxu0 0.0
    %1851 = vmatpush1.msra.mxu0 0.0
    %1852 = vmatprep.subr.mxu0 0.0
    %1853 = vmatpush1.msra.mxu0 0.0
    %1854 = vmatprep.subr.mxu0 0.0
    %1855 = vmatpush1.msra.mxu0 0.0
    %1856 = vmatprep.subr.mxu0 0.0
    %1857 = vmatpush1.msra.mxu0 0.0
    %1858 = vmatprep.subr.mxu0 0.0
    %1859 = vmatpush1.msra.mxu0 0.0
    %1860 = vmatprep.subr.mxu0 0.0
    %1861 = vmatpush1.msra.mxu0 0.0
    %1862 = vmatprep.subr.mxu0 0.0
    %1863 = vmatpush1.msra.mxu0 0.0
    %1864 = vmatprep.subr.mxu0 0.0
    %1865 = vmatpush1.msra.mxu0 0.0
    %1866 = vmatprep.subr.mxu0 0.0
    %1867 = vmatpush1.msra.mxu0 0.0
    %1868 = vmatprep.subr.mxu0 0.0
    %1869 = vmatpush1.msra.mxu0 0.0
    %1870 = vmatprep.subr.mxu0 0.0
    %1871 = vmatpush1.msra.mxu0 0.0
    %1872 = vmatprep.subr.mxu0 0.0
    %1873 = vmatpush1.msra.mxu0 0.0
    %1874 = vmatprep.subr.mxu0 0.0
    %1875 = vmatpush1.msra.mxu0 0.0
    %1876 = vmatprep.subr.mxu0 0.0
    %1877 = vmatpush1.msra.mxu0 0.0
    %1878 = vmatprep.subr.mxu0 0.0
    %1879 = vmatpush1.msra.mxu0 0.0
    %1880 = vmatprep.subr.mxu0 0.0
    %1881 = vmatpush1.msra.mxu0 0.0
    %1882 = vmatprep.subr.mxu0 0.0
    %1883 = vmatpush1.msra.mxu0 0.0
    %1884 = vmatprep.subr.mxu0 0.0
    %1885 = vmatpush1.msra.mxu0 0.0
    %1886 = vmatprep.subr.mxu0 0.0
    %1887 = vmatpush1.msra.mxu0 0.0
    %1888 = vmatprep.subr.mxu0 0.0
    %1889 = vmatpush1.msra.mxu0 0.0
    %1890 = vmatprep.subr.mxu0 0.0
    %1891 = vmatpush1.msra.mxu0 0.0
    %1892 = vmatprep.subr.mxu0 0.0
    %1893 = vmatpush1.msra.mxu0 0.0
    %1894 = vmatprep.subr.mxu0 0.0
    %1895 = vmatpush1.msra.mxu0 0.0
    %1896 = vmatprep.subr.mxu0 0.0
    %1897 = vmatpush1.msra.mxu0 0.0
    %1898 = vmatprep.subr.mxu0 0.0
    %1899 = vmatpush1.msra.mxu0 0.0
    %1900 = vmatprep.subr.mxu0 0.0
    %1901 = vmatpush1.msra.mxu0 0.0
    %1902 = vmatprep.subr.mxu0 0.0
    %1903 = vmatpush1.msra.mxu0 0.0
    %1904 = vmatprep.subr.mxu0 0.0
    %1905 = vmatpush1.msra.mxu0 0.0
    %1906 = vmatprep.mubr.f32.mxu0 0.0
    %1907 = vmatmul.mubr.f32.gmra.mrb[0].mxu0 %v1840
    %v1908 = vpop.f32.mrb[0].mxu0
    %v1909 = vadd.f32 0.0, %v1908
    %v1910 = vpop.f32.mrb[0].mxu0
    %1911 = vdwg.mxu0
    %v1912 = vadd.f32 %v1760, %v1909
    %v1913 = vld [vmem:[#allocation5 + $0x240] sm:$0x1]
    %v1914 = vld [vmem:[#allocation5 + $0x1c0] sm:$0xff]
    %v1915 = vld [vmem:[#allocation5 + $0x1c8] sm:$0xff]
    %v1916 = vld [vmem:[#allocation5 + $0x1d0] sm:$0xff]
    %v1917 = vld [vmem:[#allocation5 + $0x1d8] sm:$0x3f]
    %vm1918 = vcmask 31744
    %v1920 = vsel %vm1918, %v1913, 0
    %vm1922 = vcmask 1043456
    %v1924 = vsel %vm1922, %v1912, 0
    %1926 = vmatprep.subr.mxu0 0.0
    %1927 = vmatpush1.msra.mxu0 %v1924
    %1928 = vmatprep.subr.mxu0 0.0
    %1929 = vmatpush1.msra.mxu0 0.0
    %1930 = vmatprep.subr.mxu0 0.0
    %1931 = vmatpush1.msra.mxu0 0.0
    %1932 = vmatprep.subr.mxu0 0.0
    %1933 = vmatpush1.msra.mxu0 0.0
    %1934 = vmatprep.subr.mxu0 0.0
    %1935 = vmatpush1.msra.mxu0 0.0
    %1936 = vmatprep.subr.mxu0 0.0
    %1937 = vmatpush1.msra.mxu0 0.0
    %1938 = vmatprep.subr.mxu0 0.0
    %1939 = vmatpush1.msra.mxu0 0.0
    %1940 = vmatprep.subr.mxu0 0.0
    %1941 = vmatpush1.msra.mxu0 0.0
    %1942 = vmatprep.subr.mxu0 0.0
    %1943 = vmatpush1.msra.mxu0 0.0
    %1944 = vmatprep.subr.mxu0 0.0
    %1945 = vmatpush1.msra.mxu0 0.0
    %1946 = vmatprep.subr.mxu0 0.0
    %1947 = vmatpush1.msra.mxu0 0.0
    %1948 = vmatprep.subr.mxu0 0.0
    %1949 = vmatpush1.msra.mxu0 0.0
    %1950 = vmatprep.subr.mxu0 0.0
    %1951 = vmatpush1.msra.mxu0 0.0
    %1952 = vmatprep.subr.mxu0 0.0
    %1953 = vmatpush1.msra.mxu0 0.0
    %1954 = vmatprep.subr.mxu0 0.0
    %1955 = vmatpush1.msra.mxu0 0.0
    %1956 = vmatprep.subr.mxu0 0.0
    %1957 = vmatpush1.msra.mxu0 0.0
    %1958 = vmatprep.subr.mxu0 0.0
    %1959 = vmatpush1.msra.mxu0 0.0
    %1960 = vmatprep.subr.mxu0 0.0
    %1961 = vmatpush1.msra.mxu0 0.0
    %1962 = vmatprep.subr.mxu0 0.0
    %1963 = vmatpush1.msra.mxu0 0.0
    %1964 = vmatprep.subr.mxu0 0.0
    %1965 = vmatpush1.msra.mxu0 0.0
    %1966 = vmatprep.subr.mxu0 0.0
    %1967 = vmatpush1.msra.mxu0 0.0
    %1968 = vmatprep.subr.mxu0 0.0
    %1969 = vmatpush1.msra.mxu0 0.0
    %1970 = vmatprep.subr.mxu0 0.0
    %1971 = vmatpush1.msra.mxu0 0.0
    %1972 = vmatprep.subr.mxu0 0.0
    %1973 = vmatpush1.msra.mxu0 0.0
    %1974 = vmatprep.subr.mxu0 0.0
    %1975 = vmatpush1.msra.mxu0 0.0
    %1976 = vmatprep.subr.mxu0 0.0
    %1977 = vmatpush1.msra.mxu0 0.0
    %1978 = vmatprep.subr.mxu0 0.0
    %1979 = vmatpush1.msra.mxu0 0.0
    %1980 = vmatprep.subr.mxu0 0.0
    %1981 = vmatpush1.msra.mxu0 0.0
    %1982 = vmatprep.subr.mxu0 0.0
    %1983 = vmatpush1.msra.mxu0 0.0
    %1984 = vmatprep.subr.mxu0 0.0
    %1985 = vmatpush1.msra.mxu0 0.0
    %1986 = vmatprep.subr.mxu0 0.0
    %1987 = vmatpush1.msra.mxu0 0.0
    %1988 = vmatprep.subr.mxu0 0.0
    %1989 = vmatpush1.msra.mxu0 0.0
    %1990 = vmatprep.mubr.f32.mxu0 0.0
    %1991 = vmatmul.mubr.f32.gmra.mrb[0].mxu0 %v1920
    %v1992 = vpop.f32.mrb[0].mxu0
    %v1993 = vadd.f32 0.0, %v1992
    %v1994 = vpop.f32.mrb[0].mxu0
    %1995 = vdwg.mxu0
    %v1996 = vld [vmem:[#allocation5 + $0x248] sm:$0x1]
    %v1997 = vld [vmem:[#allocation5 + $0x1e0] sm:$0xff]
    %v1998 = vld [vmem:[#allocation5 + $0x1e8] sm:$0xff]
    %v1999 = vld [vmem:[#allocation5 + $0x1f0] sm:$0xff]
    %v2000 = vld [vmem:[#allocation5 + $0x1f8] sm:$0x3f]
    %v2002 = vsel %vm1918, %v1996, 0
    %2004 = vmatprep.subr.mxu0 0.0
    %2005 = vmatpush1.msra.mxu0 %v1924
    %2006 = vmatprep.subr.mxu0 0.0
    %2007 = vmatpush1.msra.mxu0 0.0
    %2008 = vmatprep.subr.mxu0 0.0
    %2009 = vmatpush1.msra.mxu0 0.0
    %2010 = vmatprep.subr.mxu0 0.0
    %2011 = vmatpush1.msra.mxu0 0.0
    %2012 = vmatprep.subr.mxu0 0.0
    %2013 = vmatpush1.msra.mxu0 0.0
    %2014 = vmatprep.subr.mxu0 0.0
    %2015 = vmatpush1.msra.mxu0 0.0
    %2016 = vmatprep.subr.mxu0 0.0
    %2017 = vmatpush1.msra.mxu0 0.0
    %2018 = vmatprep.subr.mxu0 0.0
    %2019 = vmatpush1.msra.mxu0 0.0
    %2020 = vmatprep.subr.mxu0 0.0
    %2021 = vmatpush1.msra.mxu0 0.0
    %2022 = vmatprep.subr.mxu0 0.0
    %2023 = vmatpush1.msra.mxu0 0.0
    %2024 = vmatprep.subr.mxu0 0.0
    %2025 = vmatpush1.msra.mxu0 0.0
    %2026 = vmatprep.subr.mxu0 0.0
    %2027 = vmatpush1.msra.mxu0 0.0
    %2028 = vmatprep.subr.mxu0 0.0
    %2029 = vmatpush1.msra.mxu0 0.0
    %2030 = vmatprep.subr.mxu0 0.0
    %2031 = vmatpush1.msra.mxu0 0.0
    %2032 = vmatprep.subr.mxu0 0.0
    %2033 = vmatpush1.msra.mxu0 0.0
    %2034 = vmatprep.subr.mxu0 0.0
    %2035 = vmatpush1.msra.mxu0 0.0
    %2036 = vmatprep.subr.mxu0 0.0
    %2037 = vmatpush1.msra.mxu0 0.0
    %2038 = vmatprep.subr.mxu0 0.0
    %2039 = vmatpush1.msra.mxu0 0.0
    %2040 = vmatprep.subr.mxu0 0.0
    %2041 = vmatpush1.msra.mxu0 0.0
    %2042 = vmatprep.subr.mxu0 0.0
    %2043 = vmatpush1.msra.mxu0 0.0
    %2044 = vmatprep.subr.mxu0 0.0
    %2045 = vmatpush1.msra.mxu0 0.0
    %2046 = vmatprep.subr.mxu0 0.0
    %2047 = vmatpush1.msra.mxu0 0.0
    %2048 = vmatprep.subr.mxu0 0.0
    %2049 = vmatpush1.msra.mxu0 0.0
    %2050 = vmatprep.subr.mxu0 0.0
    %2051 = vmatpush1.msra.mxu0 0.0
    %2052 = vmatprep.subr.mxu0 0.0
    %2053 = vmatpush1.msra.mxu0 0.0
    %2054 = vmatprep.subr.mxu0 0.0
    %2055 = vmatpush1.msra.mxu0 0.0
    %2056 = vmatprep.subr.mxu0 0.0
    %2057 = vmatpush1.msra.mxu0 0.0
    %2058 = vmatprep.subr.mxu0 0.0
    %2059 = vmatpush1.msra.mxu0 0.0
    %2060 = vmatprep.subr.mxu0 0.0
    %2061 = vmatpush1.msra.mxu0 0.0
    %2062 = vmatprep.subr.mxu0 0.0
    %2063 = vmatpush1.msra.mxu0 0.0
    %2064 = vmatprep.subr.mxu0 0.0
    %2065 = vmatpush1.msra.mxu0 0.0
    %2066 = vmatprep.subr.mxu0 0.0
    %2067 = vmatpush1.msra.mxu0 0.0
    %2068 = vmatprep.mubr.f32.mxu0 0.0
    %2069 = vmatmul.mubr.f32.gmra.mrb[0].mxu0 %v2002
    %v2070 = vpop.f32.mrb[0].mxu0
    %v2071 = vadd.f32 0.0, %v2070
    %v2072 = vpop.f32.mrb[0].mxu0
    %2073 = vdwg.mxu0
    %vm2074 = vcmask 244736
    %v2076 = vsel %vm2074, %v2071, 0
    %vm2078 = vcmask 1045504
    %v2080 = vsel %vm2078, %v2000, 0
    %2082 = vmatprep.subr.mxu0 0.0
    %2083 = vmatpush1.msra.mxu0 %v1997
    %2084 = vmatprep.subr.mxu0 0.0
    %2085 = vmatpush1.msra.mxu0 %v1998
    %2086 = vmatprep.subr.mxu0 0.0
    %2087 = vmatpush1.msra.mxu0 %v1999
    %2088 = vmatprep.subr.mxu0 0.0
    %2089 = vmatpush1.msra.mxu0 %v2080
    %2090 = vmatprep.subr.mxu0 0.0
    %2091 = vmatpush1.msra.mxu0 0.0
    %2092 = vmatprep.subr.mxu0 0.0
    %2093 = vmatpush1.msra.mxu0 0.0
    %2094 = vmatprep.subr.mxu0 0.0
    %2095 = vmatpush1.msra.mxu0 0.0
    %2096 = vmatprep.subr.mxu0 0.0
    %2097 = vmatpush1.msra.mxu0 0.0
    %2098 = vmatprep.subr.mxu0 0.0
    %2099 = vmatpush1.msra.mxu0 0.0
    %2100 = vmatprep.subr.mxu0 0.0
    %2101 = vmatpush1.msra.mxu0 0.0
    %2102 = vmatprep.subr.mxu0 0.0
    %2103 = vmatpush1.msra.mxu0 0.0
    %2104 = vmatprep.subr.mxu0 0.0
    %2105 = vmatpush1.msra.mxu0 0.0
    %2106 = vmatprep.subr.mxu0 0.0
    %2107 = vmatpush1.msra.mxu0 0.0
    %2108 = vmatprep.subr.mxu0 0.0
    %2109 = vmatpush1.msra.mxu0 0.0
    %2110 = vmatprep.subr.mxu0 0.0
    %2111 = vmatpush1.msra.mxu0 0.0
    %2112 = vmatprep.subr.mxu0 0.0
    %2113 = vmatpush1.msra.mxu0 0.0
    %2114 = vmatprep.subr.mxu0 0.0
    %2115 = vmatpush1.msra.mxu0 0.0
    %2116 = vmatprep.subr.mxu0 0.0
    %2117 = vmatpush1.msra.mxu0 0.0
    %2118 = vmatprep.subr.mxu0 0.0
    %2119 = vmatpush1.msra.mxu0 0.0
    %2120 = vmatprep.subr.mxu0 0.0
    %2121 = vmatpush1.msra.mxu0 0.0
    %2122 = vmatprep.subr.mxu0 0.0
    %2123 = vmatpush1.msra.mxu0 0.0
    %2124 = vmatprep.subr.mxu0 0.0
    %2125 = vmatpush1.msra.mxu0 0.0
    %2126 = vmatprep.subr.mxu0 0.0
    %2127 = vmatpush1.msra.mxu0 0.0
    %2128 = vmatprep.subr.mxu0 0.0
    %2129 = vmatpush1.msra.mxu0 0.0
    %2130 = vmatprep.subr.mxu0 0.0
    %2131 = vmatpush1.msra.mxu0 0.0
    %2132 = vmatprep.subr.mxu0 0.0
    %2133 = vmatpush1.msra.mxu0 0.0
    %2134 = vmatprep.subr.mxu0 0.0
    %2135 = vmatpush1.msra.mxu0 0.0
    %2136 = vmatprep.subr.mxu0 0.0
    %2137 = vmatpush1.msra.mxu0 0.0
    %2138 = vmatprep.subr.mxu0 0.0
    %2139 = vmatpush1.msra.mxu0 0.0
    %2140 = vmatprep.subr.mxu0 0.0
    %2141 = vmatpush1.msra.mxu0 0.0
    %2142 = vmatprep.subr.mxu0 0.0
    %2143 = vmatpush1.msra.mxu0 0.0
    %2144 = vmatprep.subr.mxu0 0.0
    %2145 = vmatpush1.msra.mxu0 0.0
    %2146 = vmatprep.mubr.f32.mxu0 0.0
    %2147 = vmatmul.mubr.f32.gmra.mrb[0].mxu0 %v2076
    %v2148 = vpop.f32.mrb[0].mxu0
    %v2149 = vadd.f32 0.0, %v2148
    %v2150 = vpop.f32.mrb[0].mxu0
    %2151 = vdwg.mxu0
    %v2153 = vsel %vm2074, %v1993, 0
    %v2156 = vsel %vm2078, %v1917, 0
    %2158 = vmatprep.subr.mxu0 0.0
    %2159 = vmatpush1.msra.mxu0 %v1914
    %2160 = vmatprep.subr.mxu0 0.0
    %2161 = vmatpush1.msra.mxu0 %v1915
    %2162 = vmatprep.subr.mxu0 0.0
    %2163 = vmatpush1.msra.mxu0 %v1916
    %2164 = vmatprep.subr.mxu0 0.0
    %2165 = vmatpush1.msra.mxu0 %v2156
    %2166 = vmatprep.subr.mxu0 0.0
    %2167 = vmatpush1.msra.mxu0 0.0
    %2168 = vmatprep.subr.mxu0 0.0
    %2169 = vmatpush1.msra.mxu0 0.0
    %2170 = vmatprep.subr.mxu0 0.0
    %2171 = vmatpush1.msra.mxu0 0.0
    %2172 = vmatprep.subr.mxu0 0.0
    %2173 = vmatpush1.msra.mxu0 0.0
    %2174 = vmatprep.subr.mxu0 0.0
    %2175 = vmatpush1.msra.mxu0 0.0
    %2176 = vmatprep.subr.mxu0 0.0
    %2177 = vmatpush1.msra.mxu0 0.0
    %2178 = vmatprep.subr.mxu0 0.0
    %2179 = vmatpush1.msra.mxu0 0.0
    %2180 = vmatprep.subr.mxu0 0.0
    %2181 = vmatpush1.msra.mxu0 0.0
    %2182 = vmatprep.subr.mxu0 0.0
    %2183 = vmatpush1.msra.mxu0 0.0
    %2184 = vmatprep.subr.mxu0 0.0
    %2185 = vmatpush1.msra.mxu0 0.0
    %2186 = vmatprep.subr.mxu0 0.0
    %2187 = vmatpush1.msra.mxu0 0.0
    %2188 = vmatprep.subr.mxu0 0.0
    %2189 = vmatpush1.msra.mxu0 0.0
    %2190 = vmatprep.subr.mxu0 0.0
    %2191 = vmatpush1.msra.mxu0 0.0
    %2192 = vmatprep.subr.mxu0 0.0
    %2193 = vmatpush1.msra.mxu0 0.0
    %2194 = vmatprep.subr.mxu0 0.0
    %2195 = vmatpush1.msra.mxu0 0.0
    %2196 = vmatprep.subr.mxu0 0.0
    %2197 = vmatpush1.msra.mxu0 0.0
    %2198 = vmatprep.subr.mxu0 0.0
    %2199 = vmatpush1.msra.mxu0 0.0
    %2200 = vmatprep.subr.mxu0 0.0
    %2201 = vmatpush1.msra.mxu0 0.0
    %2202 = vmatprep.subr.mxu0 0.0
    %2203 = vmatpush1.msra.mxu0 0.0
    %2204 = vmatprep.subr.mxu0 0.0
    %2205 = vmatpush1.msra.mxu0 0.0
    %2206 = vmatprep.subr.mxu0 0.0
    %2207 = vmatpush1.msra.mxu0 0.0
    %2208 = vmatprep.subr.mxu0 0.0
    %2209 = vmatpush1.msra.mxu0 0.0
    %2210 = vmatprep.subr.mxu0 0.0
    %2211 = vmatpush1.msra.mxu0 0.0
    %2212 = vmatprep.subr.mxu0 0.0
    %2213 = vmatpush1.msra.mxu0 0.0
    %2214 = vmatprep.subr.mxu0 0.0
    %2215 = vmatpush1.msra.mxu0 0.0
    %2216 = vmatprep.subr.mxu0 0.0
    %2217 = vmatpush1.msra.mxu0 0.0
    %2218 = vmatprep.subr.mxu0 0.0
    %2219 = vmatpush1.msra.mxu0 0.0
    %2220 = vmatprep.subr.mxu0 0.0
    %2221 = vmatpush1.msra.mxu0 0.0
    %2222 = vmatprep.mubr.f32.mxu0 0.0
    %2223 = vmatmul.mubr.f32.gmra.mrb[0].mxu0 %v2153
    %v2224 = vpop.f32.mrb[0].mxu0
    %v2225 = vadd.f32 %v2149, %v2224
    %v2226 = vpop.f32.mrb[0].mxu0
    %2227 = vdwg.mxu0
    %v2228 = vld [vmem:[#allocation5 + $0x250] sm:$0x1]
    %v2229 = vld [vmem:[#allocation5 + $0x200] sm:$0xff]
    %v2230 = vld [vmem:[#allocation5 + $0x208] sm:$0xff]
    %v2231 = vld [vmem:[#allocation5 + $0x210] sm:$0xff]
    %v2232 = vld [vmem:[#allocation5 + $0x218] sm:$0x3f]
    %v2234 = vsel %vm1918, %v2228, 0
    %2236 = vmatprep.subr.mxu0 0.0
    %2237 = vmatpush1.msra.mxu0 %v1924
    %2238 = vmatprep.subr.mxu0 0.0
    %2239 = vmatpush1.msra.mxu0 0.0
    %2240 = vmatprep.subr.mxu0 0.0
    %2241 = vmatpush1.msra.mxu0 0.0
    %2242 = vmatprep.subr.mxu0 0.0
    %2243 = vmatpush1.msra.mxu0 0.0
    %2244 = vmatprep.subr.mxu0 0.0
    %2245 = vmatpush1.msra.mxu0 0.0
    %2246 = vmatprep.subr.mxu0 0.0
    %2247 = vmatpush1.msra.mxu0 0.0
    %2248 = vmatprep.subr.mxu0 0.0
    %2249 = vmatpush1.msra.mxu0 0.0
    %2250 = vmatprep.subr.mxu0 0.0
    %2251 = vmatpush1.msra.mxu0 0.0
    %2252 = vmatprep.subr.mxu0 0.0
    %2253 = vmatpush1.msra.mxu0 0.0
    %2254 = vmatprep.subr.mxu0 0.0
    %2255 = vmatpush1.msra.mxu0 0.0
    %2256 = vmatprep.subr.mxu0 0.0
    %2257 = vmatpush1.msra.mxu0 0.0
    %2258 = vmatprep.subr.mxu0 0.0
    %2259 = vmatpush1.msra.mxu0 0.0
    %2260 = vmatprep.subr.mxu0 0.0
    %2261 = vmatpush1.msra.mxu0 0.0
    %2262 = vmatprep.subr.mxu0 0.0
    %2263 = vmatpush1.msra.mxu0 0.0
    %2264 = vmatprep.subr.mxu0 0.0
    %2265 = vmatpush1.msra.mxu0 0.0
    %2266 = vmatprep.subr.mxu0 0.0
    %2267 = vmatpush1.msra.mxu0 0.0
    %2268 = vmatprep.subr.mxu0 0.0
    %2269 = vmatpush1.msra.mxu0 0.0
    %2270 = vmatprep.subr.mxu0 0.0
    %2271 = vmatpush1.msra.mxu0 0.0
    %2272 = vmatprep.subr.mxu0 0.0
    %2273 = vmatpush1.msra.mxu0 0.0
    %2274 = vmatprep.subr.mxu0 0.0
    %2275 = vmatpush1.msra.mxu0 0.0
    %2276 = vmatprep.subr.mxu0 0.0
    %2277 = vmatpush1.msra.mxu0 0.0
    %2278 = vmatprep.subr.mxu0 0.0
    %2279 = vmatpush1.msra.mxu0 0.0
    %2280 = vmatprep.subr.mxu0 0.0
    %2281 = vmatpush1.msra.mxu0 0.0
    %2282 = vmatprep.subr.mxu0 0.0
    %2283 = vmatpush1.msra.mxu0 0.0
    %2284 = vmatprep.subr.mxu0 0.0
    %2285 = vmatpush1.msra.mxu0 0.0
    %2286 = vmatprep.subr.mxu0 0.0
    %2287 = vmatpush1.msra.mxu0 0.0
    %2288 = vmatprep.subr.mxu0 0.0
    %2289 = vmatpush1.msra.mxu0 0.0
    %2290 = vmatprep.subr.mxu0 0.0
    %2291 = vmatpush1.msra.mxu0 0.0
    %2292 = vmatprep.subr.mxu0 0.0
    %2293 = vmatpush1.msra.mxu0 0.0
    %2294 = vmatprep.subr.mxu0 0.0
    %2295 = vmatpush1.msra.mxu0 0.0
    %2296 = vmatprep.subr.mxu0 0.0
    %2297 = vmatpush1.msra.mxu0 0.0
    %2298 = vmatprep.subr.mxu0 0.0
    %2299 = vmatpush1.msra.mxu0 0.0
    %2300 = vmatprep.mubr.f32.mxu0 0.0
    %2301 = vmatmul.mubr.f32.gmra.mrb[0].mxu0 %v2234
    %v2302 = vpop.f32.mrb[0].mxu0
    %v2303 = vadd.f32 0.0, %v2302
    %v2304 = vpop.f32.mrb[0].mxu0
    %2305 = vdwg.mxu0
    %v2307 = vsel %vm2074, %v2303, 0
    %v2310 = vsel %vm2078, %v2232, 0
    %2312 = vmatprep.subr.mxu0 0.0
    %2313 = vmatpush1.msra.mxu0 %v2229
    %2314 = vmatprep.subr.mxu0 0.0
    %2315 = vmatpush1.msra.mxu0 %v2230
    %2316 = vmatprep.subr.mxu0 0.0
    %2317 = vmatpush1.msra.mxu0 %v2231
    %2318 = vmatprep.subr.mxu0 0.0
    %2319 = vmatpush1.msra.mxu0 %v2310
    %2320 = vmatprep.subr.mxu0 0.0
    %2321 = vmatpush1.msra.mxu0 0.0
    %2322 = vmatprep.subr.mxu0 0.0
    %2323 = vmatpush1.msra.mxu0 0.0
    %2324 = vmatprep.subr.mxu0 0.0
    %2325 = vmatpush1.msra.mxu0 0.0
    %2326 = vmatprep.subr.mxu0 0.0
    %2327 = vmatpush1.msra.mxu0 0.0
    %2328 = vmatprep.subr.mxu0 0.0
    %2329 = vmatpush1.msra.mxu0 0.0
    %2330 = vmatprep.subr.mxu0 0.0
    %2331 = vmatpush1.msra.mxu0 0.0
    %2332 = vmatprep.subr.mxu0 0.0
    %2333 = vmatpush1.msra.mxu0 0.0
    %2334 = vmatprep.subr.mxu0 0.0
    %2335 = vmatpush1.msra.mxu0 0.0
    %2336 = vmatprep.subr.mxu0 0.0
    %2337 = vmatpush1.msra.mxu0 0.0
    %2338 = vmatprep.subr.mxu0 0.0
    %2339 = vmatpush1.msra.mxu0 0.0
    %2340 = vmatprep.subr.mxu0 0.0
    %2341 = vmatpush1.msra.mxu0 0.0
    %2342 = vmatprep.subr.mxu0 0.0
    %2343 = vmatpush1.msra.mxu0 0.0
    %2344 = vmatprep.subr.mxu0 0.0
    %2345 = vmatpush1.msra.mxu0 0.0
    %2346 = vmatprep.subr.mxu0 0.0
    %2347 = vmatpush1.msra.mxu0 0.0
    %2348 = vmatprep.subr.mxu0 0.0
    %2349 = vmatpush1.msra.mxu0 0.0
    %2350 = vmatprep.subr.mxu0 0.0
    %2351 = vmatpush1.msra.mxu0 0.0
    %2352 = vmatprep.subr.mxu0 0.0
    %2353 = vmatpush1.msra.mxu0 0.0
    %2354 = vmatprep.subr.mxu0 0.0
    %2355 = vmatpush1.msra.mxu0 0.0
    %2356 = vmatprep.subr.mxu0 0.0
    %2357 = vmatpush1.msra.mxu0 0.0
    %2358 = vmatprep.subr.mxu0 0.0
    %2359 = vmatpush1.msra.mxu0 0.0
    %2360 = vmatprep.subr.mxu0 0.0
    %2361 = vmatpush1.msra.mxu0 0.0
    %2362 = vmatprep.subr.mxu0 0.0
    %2363 = vmatpush1.msra.mxu0 0.0
    %2364 = vmatprep.subr.mxu0 0.0
    %2365 = vmatpush1.msra.mxu0 0.0
    %2366 = vmatprep.subr.mxu0 0.0
    %2367 = vmatpush1.msra.mxu0 0.0
    %2368 = vmatprep.subr.mxu0 0.0
    %2369 = vmatpush1.msra.mxu0 0.0
    %2370 = vmatprep.subr.mxu0 0.0
    %2371 = vmatpush1.msra.mxu0 0.0
    %2372 = vmatprep.subr.mxu0 0.0
    %2373 = vmatpush1.msra.mxu0 0.0
    %2374 = vmatprep.subr.mxu0 0.0
    %2375 = vmatpush1.msra.mxu0 0.0
    %2376 = vmatprep.mubr.f32.mxu0 0.0
    %2377 = vmatmul.mubr.f32.gmra.mrb[0].mxu0 %v2307
    %v2378 = vpop.f32.mrb[0].mxu0
    %v2379 = vadd.f32 0.0, %v2378
    %v2380 = vpop.f32.mrb[0].mxu0
    %2381 = vdwg.mxu0
    %v2382 = vadd.f32 %v2225, %v2379
    %v2383 = vld [vmem:[#allocation5 + $0x258] sm:$0x1]
    %v2384 = vld [vmem:[#allocation5 + $0x220] sm:$0xff]
    %v2385 = vld [vmem:[#allocation5 + $0x228] sm:$0xff]
    %v2386 = vld [vmem:[#allocation5 + $0x230] sm:$0xff]
    %v2387 = vld [vmem:[#allocation5 + $0x238] sm:$0x3f]
    %v2389 = vsel %vm1918, %v2383, 0
    %2391 = vmatprep.subr.mxu0 0.0
    %2392 = vmatpush1.msra.mxu0 %v1924
    %2393 = vmatprep.subr.mxu0 0.0
    %2394 = vmatpush1.msra.mxu0 0.0
    %2395 = vmatprep.subr.mxu0 0.0
    %2396 = vmatpush1.msra.mxu0 0.0
    %2397 = vmatprep.subr.mxu0 0.0
    %2398 = vmatpush1.msra.mxu0 0.0
    %2399 = vmatprep.subr.mxu0 0.0
    %2400 = vmatpush1.msra.mxu0 0.0
    %2401 = vmatprep.subr.mxu0 0.0
    %2402 = vmatpush1.msra.mxu0 0.0
    %2403 = vmatprep.subr.mxu0 0.0
    %2404 = vmatpush1.msra.mxu0 0.0
    %2405 = vmatprep.subr.mxu0 0.0
    %2406 = vmatpush1.msra.mxu0 0.0
    %2407 = vmatprep.subr.mxu0 0.0
    %2408 = vmatpush1.msra.mxu0 0.0
    %2409 = vmatprep.subr.mxu0 0.0
    %2410 = vmatpush1.msra.mxu0 0.0
    %2411 = vmatprep.subr.mxu0 0.0
    %2412 = vmatpush1.msra.mxu0 0.0
    %2413 = vmatprep.subr.mxu0 0.0
    %2414 = vmatpush1.msra.mxu0 0.0
    %2415 = vmatprep.subr.mxu0 0.0
    %2416 = vmatpush1.msra.mxu0 0.0
    %2417 = vmatprep.subr.mxu0 0.0
    %2418 = vmatpush1.msra.mxu0 0.0
    %2419 = vmatprep.subr.mxu0 0.0
    %2420 = vmatpush1.msra.mxu0 0.0
    %2421 = vmatprep.subr.mxu0 0.0
    %2422 = vmatpush1.msra.mxu0 0.0
    %2423 = vmatprep.subr.mxu0 0.0
    %2424 = vmatpush1.msra.mxu0 0.0
    %2425 = vmatprep.subr.mxu0 0.0
    %2426 = vmatpush1.msra.mxu0 0.0
    %2427 = vmatprep.subr.mxu0 0.0
    %2428 = vmatpush1.msra.mxu0 0.0
    %2429 = vmatprep.subr.mxu0 0.0
    %2430 = vmatpush1.msra.mxu0 0.0
    %2431 = vmatprep.subr.mxu0 0.0
    %2432 = vmatpush1.msra.mxu0 0.0
    %2433 = vmatprep.subr.mxu0 0.0
    %2434 = vmatpush1.msra.mxu0 0.0
    %2435 = vmatprep.subr.mxu0 0.0
    %2436 = vmatpush1.msra.mxu0 0.0
    %2437 = vmatprep.subr.mxu0 0.0
    %2438 = vmatpush1.msra.mxu0 0.0
    %2439 = vmatprep.subr.mxu0 0.0
    %2440 = vmatpush1.msra.mxu0 0.0
    %2441 = vmatprep.subr.mxu0 0.0
    %2442 = vmatpush1.msra.mxu0 0.0
    %2443 = vmatprep.subr.mxu0 0.0
    %2444 = vmatpush1.msra.mxu0 0.0
    %2445 = vmatprep.subr.mxu0 0.0
    %2446 = vmatpush1.msra.mxu0 0.0
    %2447 = vmatprep.subr.mxu0 0.0
    %2448 = vmatpush1.msra.mxu0 0.0
    %2449 = vmatprep.subr.mxu0 0.0
    %2450 = vmatpush1.msra.mxu0 0.0
    %2451 = vmatprep.subr.mxu0 0.0
    %2452 = vmatpush1.msra.mxu0 0.0
    %2453 = vmatprep.subr.mxu0 0.0
    %2454 = vmatpush1.msra.mxu0 0.0
    %2455 = vmatprep.mubr.f32.mxu0 0.0
    %2456 = vmatmul.mubr.f32.gmra.mrb[0].mxu0 %v2389
    %v2457 = vpop.f32.mrb[0].mxu0
    %v2458 = vadd.f32 0.0, %v2457
    %v2459 = vpop.f32.mrb[0].mxu0
    %2460 = vdwg.mxu0
    %v2462 = vsel %vm2074, %v2458, 0
    %v2465 = vsel %vm2078, %v2387, 0
    %2467 = vmatprep.subr.mxu0 0.0
    %2468 = vmatpush1.msra.mxu0 %v2384
    %2469 = vmatprep.subr.mxu0 0.0
    %2470 = vmatpush1.msra.mxu0 %v2385
    %2471 = vmatprep.subr.mxu0 0.0
    %2472 = vmatpush1.msra.mxu0 %v2386
    %2473 = vmatprep.subr.mxu0 0.0
    %2474 = vmatpush1.msra.mxu0 %v2465
    %2475 = vmatprep.subr.mxu0 0.0
    %2476 = vmatpush1.msra.mxu0 0.0
    %2477 = vmatprep.subr.mxu0 0.0
    %2478 = vmatpush1.msra.mxu0 0.0
    %2479 = vmatprep.subr.mxu0 0.0
    %2480 = vmatpush1.msra.mxu0 0.0
    %2481 = vmatprep.subr.mxu0 0.0
    %2482 = vmatpush1.msra.mxu0 0.0
    %2483 = vmatprep.subr.mxu0 0.0
    %2484 = vmatpush1.msra.mxu0 0.0
    %2485 = vmatprep.subr.mxu0 0.0
    %2486 = vmatpush1.msra.mxu0 0.0
    %2487 = vmatprep.subr.mxu0 0.0
    %2488 = vmatpush1.msra.mxu0 0.0
    %2489 = vmatprep.subr.mxu0 0.0
    %2490 = vmatpush1.msra.mxu0 0.0
    %2491 = vmatprep.subr.mxu0 0.0
    %2492 = vmatpush1.msra.mxu0 0.0
    %2493 = vmatprep.subr.mxu0 0.0
    %2494 = vmatpush1.msra.mxu0 0.0
    %2495 = vmatprep.subr.mxu0 0.0
    %2496 = vmatpush1.msra.mxu0 0.0
    %2497 = vmatprep.subr.mxu0 0.0
    %2498 = vmatpush1.msra.mxu0 0.0
    %2499 = vmatprep.subr.mxu0 0.0
    %2500 = vmatpush1.msra.mxu0 0.0
    %2501 = vmatprep.subr.mxu0 0.0
    %2502 = vmatpush1.msra.mxu0 0.0
    %2503 = vmatprep.subr.mxu0 0.0
    %2504 = vmatpush1.msra.mxu0 0.0
    %2505 = vmatprep.subr.mxu0 0.0
    %2506 = vmatpush1.msra.mxu0 0.0
    %2507 = vmatprep.subr.mxu0 0.0
    %2508 = vmatpush1.msra.mxu0 0.0
    %2509 = vmatprep.subr.mxu0 0.0
    %2510 = vmatpush1.msra.mxu0 0.0
    %2511 = vmatprep.subr.mxu0 0.0
    %2512 = vmatpush1.msra.mxu0 0.0
    %2513 = vmatprep.subr.mxu0 0.0
    %2514 = vmatpush1.msra.mxu0 0.0
    %2515 = vmatprep.subr.mxu0 0.0
    %2516 = vmatpush1.msra.mxu0 0.0
    %2517 = vmatprep.subr.mxu0 0.0
    %2518 = vmatpush1.msra.mxu0 0.0
    %2519 = vmatprep.subr.mxu0 0.0
    %2520 = vmatpush1.msra.mxu0 0.0
    %2521 = vmatprep.subr.mxu0 0.0
    %2522 = vmatpush1.msra.mxu0 0.0
    %2523 = vmatprep.subr.mxu0 0.0
    %2524 = vmatpush1.msra.mxu0 0.0
    %2525 = vmatprep.subr.mxu0 0.0
    %2526 = vmatpush1.msra.mxu0 0.0
    %2527 = vmatprep.subr.mxu0 0.0
    %2528 = vmatpush1.msra.mxu0 0.0
    %2529 = vmatprep.subr.mxu0 0.0
    %2530 = vmatpush1.msra.mxu0 0.0
    %2531 = vmatprep.mubr.f32.mxu0 0.0
    %2532 = vmatmul.mubr.f32.gmra.mrb[0].mxu0 %v2462
    %v2533 = vpop.f32.mrb[0].mxu0
    %v2534 = vadd.f32 0.0, %v2533
    %v2535 = vpop.f32.mrb[0].mxu0
    %2536 = vdwg.mxu0
    %v2537 = vadd.f32 %v2382, %v2534
    %v2538 = vld [vmem:[#allocation5 + $0x260] sm:$0x1]
    %v2539 = vmul.f32 %v2537, %v2538
    %vm2540 = vcmask 483328
    %2541 = vst.msk [vmem:[#allocation7] sm:$0x1] %vm2540, %v2539
    %2543 = vrot.lane.b32.xlu0 %v2539, 68
    %v2544 = vpop.permute.xlu0 %2543
    %s2546 = scalar_lea.vmem [#allocation7], 1
    %2547 = vst.msk [vmem:[%s2546] sm:$0x1] %vm2540, %v2544
    // Predicated region
    $region18: #{istftnetfe_forward.1} parent=1 // pred_check
      _
    $region19: #{istftnetfe_forward.1} parent=1 // pred_check_branch
      %2549 = sbr.rel (0) target = $region21
    $region20: #{istftnetfe_forward.1} parent=1 // pred_region
      %s2551 = ssub.s32 32, 32
      %2552 = vsyncadd [#allocation4], %s2551
      %s2553 = sshll.u32 [#allocation7], 4
      %s2554 = int_to_ptr.vmem [resolvable:$true] %s2553
      %2559 = dma.vmem_to_hbm [thread:$0]  %s2554, 32, %s2, [#allocation4], 16, 16, 1
    $region21: #{istftnetfe_forward.1} parent=1 // pred_fallthru
      _
    // Predicated region
    $region22: #{istftnetfe_forward.1} parent=1 // pred_check
      _
    $region23: #{istftnetfe_forward.1} parent=1 // pred_check_branch
      %2561 = sbr.rel (0) target = $region25
    $region24: #{istftnetfe_forward.1} parent=1 // pred_region
      %2562 = dma.done [#allocation4], 32
    $region25: #{istftnetfe_forward.1} parent=1 // pred_fallthru
      _
    %2563 = vsyncpa [#allocation3], 1
    %2564 = vsyncpa [#allocation6], 1
    %2565 = vsyncpa [#allocation4], 1

</llo_original>
